<compile_context>
chip_gen: v7x
topology: tpu7x:2x2x1
jax: 0.10.0
libtpu: 0.0.40
codegen_flags: <defaults>
</compile_context>

<pallas_src>
import functools

import jax
import jax.numpy as jnp
import numpy as np
from jax.experimental import pallas as pl
from jax.experimental.pallas import tpu as pltpu


def temporal_attn_kernel(x_ref, ec_ref, pos_ref, wqv_ref, wk_ref, wl_t_ref,
                         bl_ref, out_ref, attn_ref, ctx_ref,
                         *, n_heads, num_time_steps, residual):
    nb, T, F = x_ref.shape

    # temporal_inputs = inputs + position_embeddings  (f32 elementwise)
    ti = x_ref[...] + pos_ref[...][None, :, :]                        # (nb, T, F)

    # Fold (nb, T) into the matmul M dimension; bf16 MXU operands, f32 accum.
    ti2 = ti.reshape(nb * T, F).astype(jnp.bfloat16)
    ec2 = ec_ref[...].reshape(nb * T, F).astype(jnp.bfloat16)

    # Fused Q|V projection (both consume temporal_inputs); K from EC.
    qv = jnp.dot(ti2, wqv_ref[...], preferred_element_type=jnp.float32)  # (nb*T, 2F)
    k = jnp.dot(ec2, wk_ref[...], preferred_element_type=jnp.float32)    # (nb*T, F)

    q3 = qv[:, :F].reshape(nb, T, F)
    v3 = qv[:, F:].reshape(nb, T, F)
    k3 = k.reshape(nb, T, F)

    d = F // n_heads
    scale = 1.0 / (num_time_steps ** 0.5)

    # Static unrolled head loop: batched matmuls over the node block, results
    # stored in place (no concatenates).
    for h in range(n_heads):
        qh = q3[:, :, h * d:(h + 1) * d].astype(jnp.bfloat16)         # (nb, T, d)
        kh = k3[:, :, h * d:(h + 1) * d].astype(jnp.bfloat16)
        vh = v3[:, :, h * d:(h + 1) * d].astype(jnp.bfloat16)

        s = jnp.einsum('ntd,nsd->nts', qh, kh,
                       preferred_element_type=jnp.float32) * scale    # (nb, T, T)
        s = s - jnp.max(s, axis=-1, keepdims=True)
        e = jnp.exp(s)
        a = e * pl.reciprocal(jnp.sum(e, axis=-1, keepdims=True), approx=True)

        attn_ref[:, :, h * T:(h + 1) * T] = a                         # ST dependency
        ctx_ref[:, :, h * d:(h + 1) * d] = jnp.einsum(
            'nts,nsd->ntd', a.astype(jnp.bfloat16), vh,
            preferred_element_type=jnp.float32)

    # feedforward: relu(Linear(ctx)) + ctx, then residual, then mean over time.
    ctx = ctx_ref[...]                                                # (nb, T, F)
    lin = jnp.dot(ctx.reshape(nb * T, F).astype(jnp.bfloat16), wl_t_ref[...],
                  preferred_element_type=jnp.float32) + bl_ref[...]
    ff = jnp.maximum(lin, 0.0).reshape(nb, T, F) + ctx
    out = ff + ti if residual else ff
    out_ref[...] = jnp.mean(out, axis=1, keepdims=True)               # (nb, 1, F)


def _pick_node_block(n, cap=128):
    """Largest divisor of n that is <= cap while keeping >=2 grid steps when
    possible (so both v7x TensorCores are used via the parallel grid axis)."""
    best = 1
    for nb in range(1, min(n, cap) + 1):
        if n % nb == 0 and (n // nb >= 2 or n == 1):
            best = nb
    return best


@functools.partial(jax.jit, static_argnames=("n_heads", "residual", "node_block"))
def temporal_attention_forward(inputs, EC, params, *, n_heads, residual=True,
                               node_block=None):
    N, T, F_dim = inputs.shape
    pos_emb, Wq, Wk, Wv, Wl, bl = params
    nb = node_block if node_block is not None else _pick_node_block(N)

    # One-time (jitted) weight prep: fuse Q|V, pre-transpose lin, cast to bf16.
    w_qv = jnp.concatenate([Wq, Wv], axis=1).astype(jnp.bfloat16)     # (F, 2F)
    w_k = Wk.astype(jnp.bfloat16)                                     # (F, F)
    w_l_t = Wl.T.astype(jnp.bfloat16)                                 # (F, F)
    bl2 = bl.reshape(1, F_dim).astype(jnp.float32)

    kernel = functools.partial(temporal_attn_kernel, n_heads=n_heads,
                               num_time_steps=T, residual=residual)

    out, attn = pl.pallas_call(
        kernel,
        out_shape=(
            jax.ShapeDtypeStruct((N, 1, F_dim), jnp.float32),         # mean output
            jax.ShapeDtypeStruct((N, T, n_heads * T), jnp.float32),   # ST dependency
        ),
        grid_spec=pltpu.PrefetchScalarGridSpec(
            num_scalar_prefetch=0,
            grid=(N // nb,),
            in_specs=[
                pl.BlockSpec((nb, T, F_dim), lambda n: (n, 0, 0)),        # inputs
                pl.BlockSpec((nb, T, F_dim), lambda n: (n, 0, 0)),        # EC
                pl.BlockSpec((T, F_dim), lambda n: (0, 0)),               # pos emb
                pl.BlockSpec((F_dim, 2 * F_dim), lambda n: (0, 0)),       # [Wq|Wv]
                pl.BlockSpec((F_dim, F_dim), lambda n: (0, 0)),           # Wk
                pl.BlockSpec((F_dim, F_dim), lambda n: (0, 0)),           # W_lin^T
                pl.BlockSpec((1, F_dim), lambda n: (0, 0)),               # b_lin
            ],
            out_specs=[
                pl.BlockSpec((nb, 1, F_dim), lambda n: (n, 0, 0)),
                pl.BlockSpec((nb, T, n_heads * T), lambda n: (n, 0, 0)),
            ],
            scratch_shapes=[pltpu.VMEM((nb, T, F_dim), jnp.float32)],     # ctx
        ),
        compiler_params=pltpu.CompilerParams(
            dimension_semantics=("parallel",)),
    )(inputs, EC, pos_emb, w_qv, w_k, w_l_t, bl2)
    return out.reshape(N, F_dim), attn


def reference_forward(inputs, EC, params, *, n_heads, residual=True):
    """Pure-JAX (f32) transcription of the PyTorch forward (eval mode)."""
    pos_emb, Wq, Wk, Wv, Wl, bl = params
    N, T, F_dim = inputs.shape
    ti = inputs + pos_emb[None]
    q = jnp.einsum('ntf,fg->ntg', ti, Wq)
    k = jnp.einsum('ntf,fg->ntg', EC, Wk)
    v = jnp.einsum('ntf,fg->ntg', ti, Wv)
    q_ = jnp.concatenate(jnp.split(q, n_heads, axis=2), axis=0)
    k_ = jnp.concatenate(jnp.split(k, n_heads, axis=2), axis=0)
    v_ = jnp.concatenate(jnp.split(v, n_heads, axis=2), axis=0)
    s = jnp.einsum('btd,bsd->bts', q_, k_) / (T ** 0.5)
    a = jax.nn.softmax(s, axis=2)
    st = jnp.concatenate(jnp.split(a, n_heads, axis=0), axis=2)
    o = jnp.einsum('bts,bsd->btd', a, v_)
    o = jnp.concatenate(jnp.split(o, n_heads, axis=0), axis=2)
    ff = jax.nn.relu(o @ Wl.T + bl) + o
    if residual:
        ff = ff + ti
    return jnp.mean(ff, axis=1), st


def xavier_uniform(key, shape):
    fan_out, fan_in = shape[0], shape[1]
    a = np.sqrt(6.0 / (fan_in + fan_out))
    return jax.random.uniform(key, shape, jnp.float32, minval=-a, maxval=a)


if __name__ == "__main__":
    N, T, F_dim, n_heads = 8, 8, 32, 4   # N nodes, T time steps, F features

    key = jax.random.PRNGKey(0)
    ks = jax.random.split(key, 8)
    pos_emb = xavier_uniform(ks[0], (T, F_dim))
    Wq = xavier_uniform(ks[1], (F_dim, F_dim))
    Wk = xavier_uniform(ks[2], (F_dim, F_dim))
    Wv = xavier_uniform(ks[3], (F_dim, F_dim))
    Wl = xavier_uniform(ks[4], (F_dim, F_dim))           # nn.Linear weight (out, in)
    bl = jax.random.uniform(ks[5], (F_dim,), jnp.float32, minval=-0.1, maxval=0.1)
    params = (pos_emb, Wq, Wk, Wv, Wl, bl)

    inputs = jax.random.normal(ks[6], (N, T, F_dim), jnp.float32)
    EC = jax.random.normal(ks[7], (N, T, F_dim), jnp.float32)

    out, st_dep = temporal_attention_forward(inputs, EC, params,
                                             n_heads=n_heads, residual=True)
    jax.block_until_ready((out, st_dep))

    ref_out, ref_st = reference_forward(inputs, EC, params,
                                        n_heads=n_heads, residual=True)
    assert out.shape == (N, F_dim)
    assert st_dep.shape == (N, T, n_heads * T)
    # Tolerance accounts for bf16 MXU operands (f32 accumulation) in the kernel.
    np.testing.assert_allclose(np.asarray(out), np.asarray(ref_out),
                               rtol=3e-2, atol=3e-2)
    np.testing.assert_allclose(np.asarray(st_dep), np.asarray(ref_st),
                               rtol=3e-2, atol=3e-2)

    print("KERNEL_OK")
</pallas_src>

<mosaic_0001>
module attributes {stable_mosaic.version = 11 : i64} {
  func.func @temporal_attn_kernel(%arg0: i32, %arg1: memref<4x8x32xf32, #tpu.memory_space<vmem>>, %arg2: memref<4x8x32xf32, #tpu.memory_space<vmem>>, %arg3: memref<8x32xf32, #tpu.memory_space<vmem>>, %arg4: memref<32x64xbf16, #tpu.memory_space<vmem>>, %arg5: memref<32x32xbf16, #tpu.memory_space<vmem>>, %arg6: memref<32x32xbf16, #tpu.memory_space<vmem>>, %arg7: memref<1x32xf32, #tpu.memory_space<vmem>>, %arg8: memref<4x1x32xf32, #tpu.memory_space<vmem>>, %arg9: memref<4x8x32xf32, #tpu.memory_space<vmem>>, %arg10: memref<4x8x32xf32, #tpu.memory_space<vmem>>) attributes {dimension_semantics = [#tpu.dimension_semantics<parallel>], iteration_bounds = array<i64: 2>, scalar_prefetch = 0 : i64, scratch_operands = 1 : i64, tpu.core_type = #tpu.core_type<tc>, window_params = [{transform_indices = @transform_0, window_bounds = array<i64: 4, 8, 32>}, {transform_indices = @transform_1, window_bounds = array<i64: 4, 8, 32>}, {pipeline_mode = #tpu.pipeline_mode<synchronous>, transform_indices = @transform_2, window_bounds = array<i64: 8, 32>}, {pipeline_mode = #tpu.pipeline_mode<synchronous>, transform_indices = @transform_3, window_bounds = array<i64: 32, 64>}, {pipeline_mode = #tpu.pipeline_mode<synchronous>, transform_indices = @transform_4, window_bounds = array<i64: 32, 32>}, {pipeline_mode = #tpu.pipeline_mode<synchronous>, transform_indices = @transform_5, window_bounds = array<i64: 32, 32>}, {pipeline_mode = #tpu.pipeline_mode<synchronous>, transform_indices = @transform_6, window_bounds = array<i64: 1, 32>}, {transform_indices = @transform_7, window_bounds = array<i64: 4, 1, 32>}, {transform_indices = @transform_8, window_bounds = array<i64: 4, 8, 32>}]} {
    %c0 = arith.constant 0 : index
    %c0_0 = arith.constant 0 : index
    %c0_1 = arith.constant 0 : index
    %0 = vector.load %arg1[%c0, %c0_0, %c0_1] : memref<4x8x32xf32, #tpu.memory_space<vmem>>, vector<4x8x32xf32>
    %c0_2 = arith.constant 0 : index
    %c0_3 = arith.constant 0 : index
    %1 = vector.load %arg3[%c0_2, %c0_3] : memref<8x32xf32, #tpu.memory_space<vmem>>, vector<8x32xf32>
    %2 = vector.shape_cast %1 : vector<8x32xf32> to vector<1x8x32xf32>
    %3 = vector.broadcast %2 : vector<1x8x32xf32> to vector<4x8x32xf32>
    %4 = arith.addf %0, %3 : vector<4x8x32xf32>
    %5 = vector.shape_cast %4 : vector<4x8x32xf32> to vector<32x32xf32>
    %6 = arith.truncf %5 : vector<32x32xf32> to vector<32x32xbf16>
    %c0_4 = arith.constant 0 : index
    %c0_5 = arith.constant 0 : index
    %c0_6 = arith.constant 0 : index
    %7 = vector.load %arg2[%c0_4, %c0_5, %c0_6] : memref<4x8x32xf32, #tpu.memory_space<vmem>>, vector<4x8x32xf32>
    %8 = vector.shape_cast %7 : vector<4x8x32xf32> to vector<32x32xf32>
    %9 = arith.truncf %8 : vector<32x32xf32> to vector<32x32xbf16>
    %c0_7 = arith.constant 0 : index
    %c0_8 = arith.constant 0 : index
    %10 = vector.load %arg4[%c0_7, %c0_8] : memref<32x64xbf16, #tpu.memory_space<vmem>>, vector<32x64xbf16>
    %cst = arith.constant dense<0.000000e+00> : vector<32x64xf32>
    %11 = tpu.matmul %6, %10, %cst {dimension_numbers = #tpu.dot_dimension_numbers<[1], [0], [0], [1], [0, 0, 1, 1], [], []>} : vector<32x32xbf16>, vector<32x64xbf16>, vector<32x64xf32> -> vector<32x64xf32>
    %c0_9 = arith.constant 0 : index
    %c0_10 = arith.constant 0 : index
    %12 = vector.load %arg5[%c0_9, %c0_10] : memref<32x32xbf16, #tpu.memory_space<vmem>>, vector<32x32xbf16>
    %cst_11 = arith.constant dense<0.000000e+00> : vector<32x32xf32>
    %13 = tpu.matmul %9, %12, %cst_11 {dimension_numbers = #tpu.dot_dimension_numbers<[1], [0], [0], [1], [0, 0, 1, 1], [], []>} : vector<32x32xbf16>, vector<32x32xbf16>, vector<32x32xf32> -> vector<32x32xf32>
    %14 = vector.extract_strided_slice %11 {offsets = [0, 0], sizes = [32, 32], strides = [1, 1]} : vector<32x64xf32> to vector<32x32xf32>
    %15 = vector.shape_cast %14 : vector<32x32xf32> to vector<4x8x32xf32>
    %16 = vector.extract_strided_slice %11 {offsets = [0, 32], sizes = [32, 32], strides = [1, 1]} : vector<32x64xf32> to vector<32x32xf32>
    %17 = vector.shape_cast %16 : vector<32x32xf32> to vector<4x8x32xf32>
    %18 = vector.shape_cast %13 : vector<32x32xf32> to vector<4x8x32xf32>
    %19 = vector.extract_strided_slice %15 {offsets = [0, 0, 0], sizes = [4, 8, 8], strides = [1, 1, 1]} : vector<4x8x32xf32> to vector<4x8x8xf32>
    %20 = arith.truncf %19 : vector<4x8x8xf32> to vector<4x8x8xbf16>
    %21 = vector.extract_strided_slice %18 {offsets = [0, 0, 0], sizes = [4, 8, 8], strides = [1, 1, 1]} : vector<4x8x32xf32> to vector<4x8x8xf32>
    %22 = arith.truncf %21 : vector<4x8x8xf32> to vector<4x8x8xbf16>
    %23 = vector.extract_strided_slice %17 {offsets = [0, 0, 0], sizes = [4, 8, 8], strides = [1, 1, 1]} : vector<4x8x32xf32> to vector<4x8x8xf32>
    %24 = arith.truncf %23 : vector<4x8x8xf32> to vector<4x8x8xbf16>
    "tpu.trace_start"() <{level = 10 : i32, message = "ntd,nsd->nts"}> : () -> ()
    %cst_12 = arith.constant dense<0.000000e+00> : vector<4x8x8xf32>
    %25 = tpu.matmul %20, %22, %cst_12 {dimension_numbers = #tpu.dot_dimension_numbers<[2], [2], [1], [1], [0, 0, 0, 1, 1, 1], [0], [0]>} : vector<4x8x8xbf16>, vector<4x8x8xbf16>, vector<4x8x8xf32> -> vector<4x8x8xf32>
    "tpu.trace_stop"() : () -> ()
    %cst_13 = arith.constant 0.353553385 : f32
    %26 = vector.broadcast %cst_13 : f32 to vector<4x8x8xf32>
    %27 = arith.mulf %25, %26 : vector<4x8x8xf32>
    %cst_14 = arith.constant dense<0xFF800000> : vector<4x8xf32>
    %28 = vector.multi_reduction <maximumf>, %27, %cst_14 [2] : vector<4x8x8xf32> to vector<4x8xf32>
    %29 = vector.shape_cast %28 : vector<4x8xf32> to vector<4x8x1xf32>
    %30 = vector.broadcast %29 : vector<4x8x1xf32> to vector<4x8x8xf32>
    %31 = arith.subf %27, %30 : vector<4x8x8xf32>
    %32 = math.exp %31 : vector<4x8x8xf32>
    %cst_15 = arith.constant dense<0.000000e+00> : vector<4x8xf32>
    %33 = vector.multi_reduction <add>, %32, %cst_15 [2] : vector<4x8x8xf32> to vector<4x8xf32>
    %34 = vector.shape_cast %33 : vector<4x8xf32> to vector<4x8x1xf32>
    %35 = tpu.reciprocal %34 {approx = true} : vector<4x8x1xf32> -> vector<4x8x1xf32>
    %36 = vector.broadcast %35 : vector<4x8x1xf32> to vector<4x8x8xf32>
    %37 = arith.mulf %32, %36 : vector<4x8x8xf32>
    %c0_16 = arith.constant 0 : index
    %c0_17 = arith.constant 0 : index
    %c0_18 = arith.constant 0 : index
    %38 = vector.load %arg9[%c0_16, %c0_17, %c0_18] : memref<4x8x32xf32, #tpu.memory_space<vmem>>, vector<4x8x8xf32>
    tpu.vector_store %arg9[%c0_16, %c0_17, %c0_18], %37 {strides = array<i32>} : memref<4x8x32xf32, #tpu.memory_space<vmem>>, vector<4x8x8xf32>,
    %39 = arith.truncf %37 : vector<4x8x8xf32> to vector<4x8x8xbf16>
    "tpu.trace_start"() <{level = 10 : i32, message = "nts,nsd->ntd"}> : () -> ()
    %cst_19 = arith.constant dense<0.000000e+00> : vector<4x8x8xf32>
    %40 = tpu.matmul %39, %24, %cst_19 {dimension_numbers = #tpu.dot_dimension_numbers<[2], [1], [1], [2], [0, 0, 0, 1, 1, 2], [0], [0]>} : vector<4x8x8xbf16>, vector<4x8x8xbf16>, vector<4x8x8xf32> -> vector<4x8x8xf32>
    "tpu.trace_stop"() : () -> ()
    %c0_20 = arith.constant 0 : index
    %c0_21 = arith.constant 0 : index
    %c0_22 = arith.constant 0 : index
    %41 = vector.load %arg10[%c0_20, %c0_21, %c0_22] : memref<4x8x32xf32, #tpu.memory_space<vmem>>, vector<4x8x8xf32>
    tpu.vector_store %arg10[%c0_20, %c0_21, %c0_22], %40 {strides = array<i32>} : memref<4x8x32xf32, #tpu.memory_space<vmem>>, vector<4x8x8xf32>,
    %42 = vector.extract_strided_slice %15 {offsets = [0, 0, 8], sizes = [4, 8, 8], strides = [1, 1, 1]} : vector<4x8x32xf32> to vector<4x8x8xf32>
    %43 = arith.truncf %42 : vector<4x8x8xf32> to vector<4x8x8xbf16>
    %44 = vector.extract_strided_slice %18 {offsets = [0, 0, 8], sizes = [4, 8, 8], strides = [1, 1, 1]} : vector<4x8x32xf32> to vector<4x8x8xf32>
    %45 = arith.truncf %44 : vector<4x8x8xf32> to vector<4x8x8xbf16>
    %46 = vector.extract_strided_slice %17 {offsets = [0, 0, 8], sizes = [4, 8, 8], strides = [1, 1, 1]} : vector<4x8x32xf32> to vector<4x8x8xf32>
    %47 = arith.truncf %46 : vector<4x8x8xf32> to vector<4x8x8xbf16>
    "tpu.trace_start"() <{level = 10 : i32, message = "ntd,nsd->nts"}> : () -> ()
    %cst_23 = arith.constant dense<0.000000e+00> : vector<4x8x8xf32>
    %48 = tpu.matmul %43, %45, %cst_23 {dimension_numbers = #tpu.dot_dimension_numbers<[2], [2], [1], [1], [0, 0, 0, 1, 1, 1], [0], [0]>} : vector<4x8x8xbf16>, vector<4x8x8xbf16>, vector<4x8x8xf32> -> vector<4x8x8xf32>
    "tpu.trace_stop"() : () -> ()
    %cst_24 = arith.constant 0.353553385 : f32
    %49 = vector.broadcast %cst_24 : f32 to vector<4x8x8xf32>
    %50 = arith.mulf %48, %49 : vector<4x8x8xf32>
    %cst_25 = arith.constant dense<0xFF800000> : vector<4x8xf32>
    %51 = vector.multi_reduction <maximumf>, %50, %cst_25 [2] : vector<4x8x8xf32> to vector<4x8xf32>
    %52 = vector.shape_cast %51 : vector<4x8xf32> to vector<4x8x1xf32>
    %53 = vector.broadcast %52 : vector<4x8x1xf32> to vector<4x8x8xf32>
    %54 = arith.subf %50, %53 : vector<4x8x8xf32>
    %55 = math.exp %54 : vector<4x8x8xf32>
    %cst_26 = arith.constant dense<0.000000e+00> : vector<4x8xf32>
    %56 = vector.multi_reduction <add>, %55, %cst_26 [2] : vector<4x8x8xf32> to vector<4x8xf32>
    %57 = vector.shape_cast %56 : vector<4x8xf32> to vector<4x8x1xf32>
    %58 = tpu.reciprocal %57 {approx = true} : vector<4x8x1xf32> -> vector<4x8x1xf32>
    %59 = vector.broadcast %58 : vector<4x8x1xf32> to vector<4x8x8xf32>
    %60 = arith.mulf %55, %59 : vector<4x8x8xf32>
    %c0_27 = arith.constant 0 : index
    %c0_28 = arith.constant 0 : index
    %c8 = arith.constant 8 : index
    %61 = vector.load %arg9[%c0_27, %c0_28, %c8] : memref<4x8x32xf32, #tpu.memory_space<vmem>>, vector<4x8x8xf32>
    tpu.vector_store %arg9[%c0_27, %c0_28, %c8], %60 {strides = array<i32>} : memref<4x8x32xf32, #tpu.memory_space<vmem>>, vector<4x8x8xf32>,
    %62 = arith.truncf %60 : vector<4x8x8xf32> to vector<4x8x8xbf16>
    "tpu.trace_start"() <{level = 10 : i32, message = "nts,nsd->ntd"}> : () -> ()
    %cst_29 = arith.constant dense<0.000000e+00> : vector<4x8x8xf32>
    %63 = tpu.matmul %62, %47, %cst_29 {dimension_numbers = #tpu.dot_dimension_numbers<[2], [1], [1], [2], [0, 0, 0, 1, 1, 2], [0], [0]>} : vector<4x8x8xbf16>, vector<4x8x8xbf16>, vector<4x8x8xf32> -> vector<4x8x8xf32>
    "tpu.trace_stop"() : () -> ()
    %c0_30 = arith.constant 0 : index
    %c0_31 = arith.constant 0 : index
    %c8_32 = arith.constant 8 : index
    %64 = vector.load %arg10[%c0_30, %c0_31, %c8_32] : memref<4x8x32xf32, #tpu.memory_space<vmem>>, vector<4x8x8xf32>
    tpu.vector_store %arg10[%c0_30, %c0_31, %c8_32], %63 {strides = array<i32>} : memref<4x8x32xf32, #tpu.memory_space<vmem>>, vector<4x8x8xf32>,
    %65 = vector.extract_strided_slice %15 {offsets = [0, 0, 16], sizes = [4, 8, 8], strides = [1, 1, 1]} : vector<4x8x32xf32> to vector<4x8x8xf32>
    %66 = arith.truncf %65 : vector<4x8x8xf32> to vector<4x8x8xbf16>
    %67 = vector.extract_strided_slice %18 {offsets = [0, 0, 16], sizes = [4, 8, 8], strides = [1, 1, 1]} : vector<4x8x32xf32> to vector<4x8x8xf32>
    %68 = arith.truncf %67 : vector<4x8x8xf32> to vector<4x8x8xbf16>
    %69 = vector.extract_strided_slice %17 {offsets = [0, 0, 16], sizes = [4, 8, 8], strides = [1, 1, 1]} : vector<4x8x32xf32> to vector<4x8x8xf32>
    %70 = arith.truncf %69 : vector<4x8x8xf32> to vector<4x8x8xbf16>
    "tpu.trace_start"() <{level = 10 : i32, message = "ntd,nsd->nts"}> : () -> ()
    %cst_33 = arith.constant dense<0.000000e+00> : vector<4x8x8xf32>
    %71 = tpu.matmul %66, %68, %cst_33 {dimension_numbers = #tpu.dot_dimension_numbers<[2], [2], [1], [1], [0, 0, 0, 1, 1, 1], [0], [0]>} : vector<4x8x8xbf16>, vector<4x8x8xbf16>, vector<4x8x8xf32> -> vector<4x8x8xf32>
    "tpu.trace_stop"() : () -> ()
    %cst_34 = arith.constant 0.353553385 : f32
    %72 = vector.broadcast %cst_34 : f32 to vector<4x8x8xf32>
    %73 = arith.mulf %71, %72 : vector<4x8x8xf32>
    %cst_35 = arith.constant dense<0xFF800000> : vector<4x8xf32>
    %74 = vector.multi_reduction <maximumf>, %73, %cst_35 [2] : vector<4x8x8xf32> to vector<4x8xf32>
    %75 = vector.shape_cast %74 : vector<4x8xf32> to vector<4x8x1xf32>
    %76 = vector.broadcast %75 : vector<4x8x1xf32> to vector<4x8x8xf32>
    %77 = arith.subf %73, %76 : vector<4x8x8xf32>
    %78 = math.exp %77 : vector<4x8x8xf32>
    %cst_36 = arith.constant dense<0.000000e+00> : vector<4x8xf32>
    %79 = vector.multi_reduction <add>, %78, %cst_36 [2] : vector<4x8x8xf32> to vector<4x8xf32>
    %80 = vector.shape_cast %79 : vector<4x8xf32> to vector<4x8x1xf32>
    %81 = tpu.reciprocal %80 {approx = true} : vector<4x8x1xf32> -> vector<4x8x1xf32>
    %82 = vector.broadcast %81 : vector<4x8x1xf32> to vector<4x8x8xf32>
    %83 = arith.mulf %78, %82 : vector<4x8x8xf32>
    %c0_37 = arith.constant 0 : index
    %c0_38 = arith.constant 0 : index
    %c16 = arith.constant 16 : index
    %84 = vector.load %arg9[%c0_37, %c0_38, %c16] : memref<4x8x32xf32, #tpu.memory_space<vmem>>, vector<4x8x8xf32>
    tpu.vector_store %arg9[%c0_37, %c0_38, %c16], %83 {strides = array<i32>} : memref<4x8x32xf32, #tpu.memory_space<vmem>>, vector<4x8x8xf32>,
    %85 = arith.truncf %83 : vector<4x8x8xf32> to vector<4x8x8xbf16>
    "tpu.trace_start"() <{level = 10 : i32, message = "nts,nsd->ntd"}> : () -> ()
    %cst_39 = arith.constant dense<0.000000e+00> : vector<4x8x8xf32>
    %86 = tpu.matmul %85, %70, %cst_39 {dimension_numbers = #tpu.dot_dimension_numbers<[2], [1], [1], [2], [0, 0, 0, 1, 1, 2], [0], [0]>} : vector<4x8x8xbf16>, vector<4x8x8xbf16>, vector<4x8x8xf32> -> vector<4x8x8xf32>
    "tpu.trace_stop"() : () -> ()
    %c0_40 = arith.constant 0 : index
    %c0_41 = arith.constant 0 : index
    %c16_42 = arith.constant 16 : index
    %87 = vector.load %arg10[%c0_40, %c0_41, %c16_42] : memref<4x8x32xf32, #tpu.memory_space<vmem>>, vector<4x8x8xf32>
    tpu.vector_store %arg10[%c0_40, %c0_41, %c16_42], %86 {strides = array<i32>} : memref<4x8x32xf32, #tpu.memory_space<vmem>>, vector<4x8x8xf32>,
    %88 = vector.extract_strided_slice %15 {offsets = [0, 0, 24], sizes = [4, 8, 8], strides = [1, 1, 1]} : vector<4x8x32xf32> to vector<4x8x8xf32>
    %89 = arith.truncf %88 : vector<4x8x8xf32> to vector<4x8x8xbf16>
    %90 = vector.extract_strided_slice %18 {offsets = [0, 0, 24], sizes = [4, 8, 8], strides = [1, 1, 1]} : vector<4x8x32xf32> to vector<4x8x8xf32>
    %91 = arith.truncf %90 : vector<4x8x8xf32> to vector<4x8x8xbf16>
    %92 = vector.extract_strided_slice %17 {offsets = [0, 0, 24], sizes = [4, 8, 8], strides = [1, 1, 1]} : vector<4x8x32xf32> to vector<4x8x8xf32>
    %93 = arith.truncf %92 : vector<4x8x8xf32> to vector<4x8x8xbf16>
    "tpu.trace_start"() <{level = 10 : i32, message = "ntd,nsd->nts"}> : () -> ()
    %cst_43 = arith.constant dense<0.000000e+00> : vector<4x8x8xf32>
    %94 = tpu.matmul %89, %91, %cst_43 {dimension_numbers = #tpu.dot_dimension_numbers<[2], [2], [1], [1], [0, 0, 0, 1, 1, 1], [0], [0]>} : vector<4x8x8xbf16>, vector<4x8x8xbf16>, vector<4x8x8xf32> -> vector<4x8x8xf32>
    "tpu.trace_stop"() : () -> ()
    %cst_44 = arith.constant 0.353553385 : f32
    %95 = vector.broadcast %cst_44 : f32 to vector<4x8x8xf32>
    %96 = arith.mulf %94, %95 : vector<4x8x8xf32>
    %cst_45 = arith.constant dense<0xFF800000> : vector<4x8xf32>
    %97 = vector.multi_reduction <maximumf>, %96, %cst_45 [2] : vector<4x8x8xf32> to vector<4x8xf32>
    %98 = vector.shape_cast %97 : vector<4x8xf32> to vector<4x8x1xf32>
    %99 = vector.broadcast %98 : vector<4x8x1xf32> to vector<4x8x8xf32>
    %100 = arith.subf %96, %99 : vector<4x8x8xf32>
    %101 = math.exp %100 : vector<4x8x8xf32>
    %cst_46 = arith.constant dense<0.000000e+00> : vector<4x8xf32>
    %102 = vector.multi_reduction <add>, %101, %cst_46 [2] : vector<4x8x8xf32> to vector<4x8xf32>
    %103 = vector.shape_cast %102 : vector<4x8xf32> to vector<4x8x1xf32>
    %104 = tpu.reciprocal %103 {approx = true} : vector<4x8x1xf32> -> vector<4x8x1xf32>
    %105 = vector.broadcast %104 : vector<4x8x1xf32> to vector<4x8x8xf32>
    %106 = arith.mulf %101, %105 : vector<4x8x8xf32>
    %c0_47 = arith.constant 0 : index
    %c0_48 = arith.constant 0 : index
    %c24 = arith.constant 24 : index
    %107 = vector.load %arg9[%c0_47, %c0_48, %c24] : memref<4x8x32xf32, #tpu.memory_space<vmem>>, vector<4x8x8xf32>
    tpu.vector_store %arg9[%c0_47, %c0_48, %c24], %106 {strides = array<i32>} : memref<4x8x32xf32, #tpu.memory_space<vmem>>, vector<4x8x8xf32>,
    %108 = arith.truncf %106 : vector<4x8x8xf32> to vector<4x8x8xbf16>
    "tpu.trace_start"() <{level = 10 : i32, message = "nts,nsd->ntd"}> : () -> ()
    %cst_49 = arith.constant dense<0.000000e+00> : vector<4x8x8xf32>
    %109 = tpu.matmul %108, %93, %cst_49 {dimension_numbers = #tpu.dot_dimension_numbers<[2], [1], [1], [2], [0, 0, 0, 1, 1, 2], [0], [0]>} : vector<4x8x8xbf16>, vector<4x8x8xbf16>, vector<4x8x8xf32> -> vector<4x8x8xf32>
    "tpu.trace_stop"() : () -> ()
    %c0_50 = arith.constant 0 : index
    %c0_51 = arith.constant 0 : index
    %c24_52 = arith.constant 24 : index
    %110 = vector.load %arg10[%c0_50, %c0_51, %c24_52] : memref<4x8x32xf32, #tpu.memory_space<vmem>>, vector<4x8x8xf32>
    tpu.vector_store %arg10[%c0_50, %c0_51, %c24_52], %109 {strides = array<i32>} : memref<4x8x32xf32, #tpu.memory_space<vmem>>, vector<4x8x8xf32>,
    %c0_53 = arith.constant 0 : index
    %c0_54 = arith.constant 0 : index
    %c0_55 = arith.constant 0 : index
    %111 = vector.load %arg10[%c0_53, %c0_54, %c0_55] : memref<4x8x32xf32, #tpu.memory_space<vmem>>, vector<4x8x32xf32>
    %112 = vector.shape_cast %111 : vector<4x8x32xf32> to vector<32x32xf32>
    %113 = arith.truncf %112 : vector<32x32xf32> to vector<32x32xbf16>
    %c0_56 = arith.constant 0 : index
    %c0_57 = arith.constant 0 : index
    %114 = vector.load %arg6[%c0_56, %c0_57] : memref<32x32xbf16, #tpu.memory_space<vmem>>, vector<32x32xbf16>
    %cst_58 = arith.constant dense<0.000000e+00> : vector<32x32xf32>
    %115 = tpu.matmul %113, %114, %cst_58 {dimension_numbers = #tpu.dot_dimension_numbers<[1], [0], [0], [1], [0, 0, 1, 1], [], []>} : vector<32x32xbf16>, vector<32x32xbf16>, vector<32x32xf32> -> vector<32x32xf32>
    %c0_59 = arith.constant 0 : index
    %c0_60 = arith.constant 0 : index
    %116 = vector.load %arg7[%c0_59, %c0_60] : memref<1x32xf32, #tpu.memory_space<vmem>>, vector<1x32xf32>
    %117 = vector.broadcast %116 : vector<1x32xf32> to vector<32x32xf32>
    %118 = arith.addf %115, %117 : vector<32x32xf32>
    %cst_61 = arith.constant 0.000000e+00 : f32
    %119 = vector.broadcast %cst_61 : f32 to vector<32x32xf32>
    %120 = arith.maximumf %118, %119 : vector<32x32xf32>
    %121 = vector.shape_cast %120 : vector<32x32xf32> to vector<4x8x32xf32>
    %122 = arith.addf %121, %111 : vector<4x8x32xf32>
    %123 = arith.addf %122, %4 : vector<4x8x32xf32>
    %cst_62 = arith.constant dense<0.000000e+00> : vector<4x32xf32>
    %124 = vector.multi_reduction <add>, %123, %cst_62 [1] : vector<4x8x32xf32> to vector<4x32xf32>
    %125 = vector.shape_cast %124 : vector<4x32xf32> to vector<4x1x32xf32>
    %cst_63 = arith.constant 8.000000e+00 : f32
    %126 = vector.broadcast %cst_63 : f32 to vector<4x1x32xf32>
    %127 = arith.divf %125, %126 : vector<4x1x32xf32>
    %c0_64 = arith.constant 0 : index
    %c0_65 = arith.constant 0 : index
    %c0_66 = arith.constant 0 : index
    %128 = vector.load %arg8[%c0_64, %c0_65, %c0_66] : memref<4x1x32xf32, #tpu.memory_space<vmem>>, vector<4x1x32xf32>
    tpu.vector_store %arg8[%c0_64, %c0_65, %c0_66], %127 {strides = array<i32>} : memref<4x1x32xf32, #tpu.memory_space<vmem>>, vector<4x1x32xf32>,
    return
  }
  func.func @transform_0(%arg0: i32) -> (i32, i32, i32) {
    %c0_i32 = arith.constant 0 : i32
    %c0_i32_0 = arith.constant 0 : i32
    %c0_i32_1 = arith.constant 0 : i32
    return %arg0, %c0_i32, %c0_i32_0 : i32, i32, i32
  }
  func.func @transform_1(%arg0: i32) -> (i32, i32, i32) {
    %c0_i32 = arith.constant 0 : i32
    %c0_i32_0 = arith.constant 0 : i32
    %c0_i32_1 = arith.constant 0 : i32
    return %arg0, %c0_i32, %c0_i32_0 : i32, i32, i32
  }
  func.func @transform_2(%arg0: i32) -> (i32, i32) {
    %c0_i32 = arith.constant 0 : i32
    %c0_i32_0 = arith.constant 0 : i32
    %c0_i32_1 = arith.constant 0 : i32
    return %c0_i32, %c0_i32_0 : i32, i32
  }
  func.func @transform_3(%arg0: i32) -> (i32, i32) {
    %c0_i32 = arith.constant 0 : i32
    %c0_i32_0 = arith.constant 0 : i32
    %c0_i32_1 = arith.constant 0 : i32
    return %c0_i32, %c0_i32_0 : i32, i32
  }
  func.func @transform_4(%arg0: i32) -> (i32, i32) {
    %c0_i32 = arith.constant 0 : i32
    %c0_i32_0 = arith.constant 0 : i32
    %c0_i32_1 = arith.constant 0 : i32
    return %c0_i32, %c0_i32_0 : i32, i32
  }
  func.func @transform_5(%arg0: i32) -> (i32, i32) {
    %c0_i32 = arith.constant 0 : i32
    %c0_i32_0 = arith.constant 0 : i32
    %c0_i32_1 = arith.constant 0 : i32
    return %c0_i32, %c0_i32_0 : i32, i32
  }
  func.func @transform_6(%arg0: i32) -> (i32, i32) {
    %c0_i32 = arith.constant 0 : i32
    %c0_i32_0 = arith.constant 0 : i32
    %c0_i32_1 = arith.constant 0 : i32
    return %c0_i32, %c0_i32_0 : i32, i32
  }
  func.func @transform_7(%arg0: i32) -> (i32, i32, i32) {
    %c0_i32 = arith.constant 0 : i32
    %c0_i32_0 = arith.constant 0 : i32
    %c0_i32_1 = arith.constant 0 : i32
    return %arg0, %c0_i32, %c0_i32_0 : i32, i32, i32
  }
  func.func @transform_8(%arg0: i32) -> (i32, i32, i32) {
    %c0_i32 = arith.constant 0 : i32
    %c0_i32_0 = arith.constant 0 : i32
    %c0_i32_1 = arith.constant 0 : i32
    return %arg0, %c0_i32, %c0_i32_0 : i32, i32, i32
  }
}

</mosaic_0001>

<llo_original>
// kernel: temporal_attention_forward.1
$region0: #{temporal_attention_forward.1}
  #allocation0 [shape = 'u32[]', space=smem, size = 0x4, offset = 0x4, fixed_abs, tag = 'smem constant byte address 0x4 - core index']
  #allocation1 [shape = 'u32[144,128]{1,0:T(1,128)}', space=vmem, size = 0x12000, scoped, tag = 'internal scratch']
  #allocation2 [shape = 'f32[4,8,32]{2,1,0:T(8,128)}', space=vmem, size = 0x4000, scoped, tag = 'scratch operand']
  %s0 = inlined_call_operand.vmem [shape: f32[8,8,32], index: 0, kind: input, shape index: {}]
  %s1 = inlined_call_operand.vmem [shape: f32[8,8,32], index: 1, kind: input, shape index: {}]
  %s2 = inlined_call_operand.vmem [shape: f32[8,32], index: 2, kind: input, shape index: {}]
  %s3 = inlined_call_operand.vmem [shape: bf16[32,64], index: 3, kind: input, shape index: {}]
  %s4 = inlined_call_operand.vmem [shape: bf16[32,32], index: 4, kind: input, shape index: {}]
  %s5 = inlined_call_operand.vmem [shape: bf16[32,32], index: 5, kind: input, shape index: {}]
  %s6 = inlined_call_operand.vmem [shape: f32[1,32], index: 6, kind: input, shape index: {}]
  %s7 = inlined_call_operand.hbm [shape: f32[8,1,32], index: 7, kind: output, shape index: {0}]
  %s8 = inlined_call_operand.hbm [shape: f32[8,8,32], index: 8, kind: output, shape index: {1}]
  %9 = xla_tuple %s7, %s8
  %s10 = sld [smem:[#allocation0]]
  $region69: #{temporal_attention_forward.1} parent=0
    _
  %s12 = ssub.s32 1, %s10
  %s13 = scalar_select 0, %s12, %s10
  $region1: #{temporal_attention_forward.1} parent=0
    #allocation3 [shape = 'u8[4096]{0}', space=vmem, size = 0x1000, scoped, tag = 'output window, operand 0']
    #allocation4 [shape = 's32[2]{0}', space=sflag, size = 0x8, scoped, tag = 'scoped memory for temporal_attention_forward.1']
    #allocation5 [shape = 'u8[32768]{0}', space=vmem, size = 0x8000, scoped, tag = 'output window, operand 1']
    #allocation6 [shape = 's32[2]{0}', space=sflag, size = 0x8, scoped, tag = 'scoped memory for temporal_attention_forward.1']
    %14 = vsyncpa [#allocation4], 0
    %s15 = scalar_lea.sflag [#allocation4], 1
    %16 = vsyncpa %s15, 0
    %17 = vsyncpa [#allocation6], 0
    %s18 = scalar_lea.sflag [#allocation6], 1
    %19 = vsyncpa %s18, 0
    loop: start=0, step=1, limit=4
    $region2: #{temporal_attention_forward.1} parent=1 // loop_pre_header
      _
    $region3: #{temporal_attention_forward.1} parent=1 // loop_header
      %s21 = sphi 0, %s25
      %p22 = scmp.ge.s32.totalorder %s21, 4
      %s31 = sphi 0, %s33
      %s34 = sphi 0, %s31
      %s35 = sphi 0, %s34
      %s51 = sphi 0, %s35
      %s57 = sphi 0, %s59
      %s60 = sphi 0, %s57
      %s61 = sphi 0, %s60
      %s77 = sphi 0, %s61
      %s81 = sphi 0, %s81
      %s83 = sphi 0, %s81
      %s84 = sphi 0, %s83
      %s98 = sphi 0, %s84
      %s102 = sphi 0, %s102
      %s104 = sphi 0, %s102
      %s105 = sphi 0, %s104
      %s119 = sphi 0, %s105
      %s123 = sphi 0, %s123
      %s125 = sphi 0, %s123
      %s126 = sphi 0, %s125
      %s140 = sphi 0, %s126
      %s144 = sphi 0, %s144
      %s146 = sphi 0, %s144
      %s147 = sphi 0, %s146
      %s161 = sphi 0, %s147
      %s165 = sphi 0, %s165
      %s167 = sphi 0, %s165
      %s168 = sphi 0, %s167
      %s182 = sphi 0, %s168
      %s188 = sphi 0, %s190
      %s191 = sphi 0, %s188
      %s192 = sphi 0, %s191
      %s208 = sphi 0, %s192
      %s214 = sphi 0, %s216
      %s217 = sphi 0, %s214
      %s218 = sphi 0, %s217
      %s234 = sphi 0, %s218
    $region4: #{temporal_attention_forward.1} parent=1 // loop_header_branch
      %24 = sbr.rel (%p22) target = $region8
    $region5: #{temporal_attention_forward.1} parent=1 // loop_body
      %s26 = ssub.s32 %s21, 1
      %s27 = ssub.s32 %s21, 2
      %s28 = sadd.s32 %s21, 1
      %s29 = ssub.s32 %s21, %s28
      %p30 = scmp.eq.s32.totalorder %s29, 0
      %s32 = sadd.s32 %s31, 1
      %s33 = scalar_select %p30, %s31, %s32
      %p36 = pneg %p30
      %p37 = scmp.eq.s32.totalorder %s21, 1
      %p38 = por %p36, %p37
      %p39 = scmp.ne.s32.totalorder %s31, %s34
      %p40 = scmp.eq.s32.totalorder %s21, 0
      %p41 = por %p39, %p40
      %p42 = scmp.ne.s32.totalorder %s31, %s34
      %p43 = scmp.eq.s32.totalorder %s26, 1
      %p44 = por %p42, %p43
      %p45 = scmp.ne.s32.totalorder %s34, %s35
      %p46 = scmp.eq.s32.totalorder %s26, 0
      %p47 = por %p45, %p46
      %p48 = scmp.ne.s32.totalorder %s34, %s35
      %p49 = scmp.eq.s32.totalorder %s27, 1
      %p50 = por %p48, %p49
      %p52 = scmp.ne.s32.totalorder %s35, %s51
      %p53 = scmp.eq.s32.totalorder %s27, 0
      %p54 = por %p52, %p53
      %s55 = ssub.s32 %s21, %s28
      %p56 = scmp.eq.s32.totalorder %s55, 0
      %s58 = sadd.s32 %s57, 1
      %s59 = scalar_select %p56, %s57, %s58
      %p62 = pneg %p56
      %p63 = scmp.eq.s32.totalorder %s21, 1
      %p64 = por %p62, %p63
      %p65 = scmp.ne.s32.totalorder %s57, %s60
      %p66 = scmp.eq.s32.totalorder %s21, 0
      %p67 = por %p65, %p66
      %p68 = scmp.ne.s32.totalorder %s57, %s60
      %p69 = scmp.eq.s32.totalorder %s26, 1
      %p70 = por %p68, %p69
      %p71 = scmp.ne.s32.totalorder %s60, %s61
      %p72 = scmp.eq.s32.totalorder %s26, 0
      %p73 = por %p71, %p72
      %p74 = scmp.ne.s32.totalorder %s60, %s61
      %p75 = scmp.eq.s32.totalorder %s27, 1
      %p76 = por %p74, %p75
      %p78 = scmp.ne.s32.totalorder %s61, %s77
      %p79 = scmp.eq.s32.totalorder %s27, 0
      %p80 = por %p78, %p79
      %s82 = sadd.s32 %s81, 1
      %p85 = scmp.eq.s32.totalorder %s21, 1
      %p86 = scmp.ne.s32.totalorder %s81, %s83
      %p87 = scmp.eq.s32.totalorder %s21, 0
      %p88 = por %p86, %p87
      %p89 = scmp.ne.s32.totalorder %s81, %s83
      %p90 = scmp.eq.s32.totalorder %s26, 1
      %p91 = por %p89, %p90
      %p92 = scmp.ne.s32.totalorder %s83, %s84
      %p93 = scmp.eq.s32.totalorder %s26, 0
      %p94 = por %p92, %p93
      %p95 = scmp.ne.s32.totalorder %s83, %s84
      %p96 = scmp.eq.s32.totalorder %s27, 1
      %p97 = por %p95, %p96
      %p99 = scmp.ne.s32.totalorder %s84, %s98
      %p100 = scmp.eq.s32.totalorder %s27, 0
      %p101 = por %p99, %p100
      %s103 = sadd.s32 %s102, 1
      %p106 = scmp.eq.s32.totalorder %s21, 1
      %p107 = scmp.ne.s32.totalorder %s102, %s104
      %p108 = scmp.eq.s32.totalorder %s21, 0
      %p109 = por %p107, %p108
      %p110 = scmp.ne.s32.totalorder %s102, %s104
      %p111 = scmp.eq.s32.totalorder %s26, 1
      %p112 = por %p110, %p111
      %p113 = scmp.ne.s32.totalorder %s104, %s105
      %p114 = scmp.eq.s32.totalorder %s26, 0
      %p115 = por %p113, %p114
      %p116 = scmp.ne.s32.totalorder %s104, %s105
      %p117 = scmp.eq.s32.totalorder %s27, 1
      %p118 = por %p116, %p117
      %p120 = scmp.ne.s32.totalorder %s105, %s119
      %p121 = scmp.eq.s32.totalorder %s27, 0
      %p122 = por %p120, %p121
      %s124 = sadd.s32 %s123, 1
      %p127 = scmp.eq.s32.totalorder %s21, 1
      %p128 = scmp.ne.s32.totalorder %s123, %s125
      %p129 = scmp.eq.s32.totalorder %s21, 0
      %p130 = por %p128, %p129
      %p131 = scmp.ne.s32.totalorder %s123, %s125
      %p132 = scmp.eq.s32.totalorder %s26, 1
      %p133 = por %p131, %p132
      %p134 = scmp.ne.s32.totalorder %s125, %s126
      %p135 = scmp.eq.s32.totalorder %s26, 0
      %p136 = por %p134, %p135
      %p137 = scmp.ne.s32.totalorder %s125, %s126
      %p138 = scmp.eq.s32.totalorder %s27, 1
      %p139 = por %p137, %p138
      %p141 = scmp.ne.s32.totalorder %s126, %s140
      %p142 = scmp.eq.s32.totalorder %s27, 0
      %p143 = por %p141, %p142
      %s145 = sadd.s32 %s144, 1
      %p148 = scmp.eq.s32.totalorder %s21, 1
      %p149 = scmp.ne.s32.totalorder %s144, %s146
      %p150 = scmp.eq.s32.totalorder %s21, 0
      %p151 = por %p149, %p150
      %p152 = scmp.ne.s32.totalorder %s144, %s146
      %p153 = scmp.eq.s32.totalorder %s26, 1
      %p154 = por %p152, %p153
      %p155 = scmp.ne.s32.totalorder %s146, %s147
      %p156 = scmp.eq.s32.totalorder %s26, 0
      %p157 = por %p155, %p156
      %p158 = scmp.ne.s32.totalorder %s146, %s147
      %p159 = scmp.eq.s32.totalorder %s27, 1
      %p160 = por %p158, %p159
      %p162 = scmp.ne.s32.totalorder %s147, %s161
      %p163 = scmp.eq.s32.totalorder %s27, 0
      %p164 = por %p162, %p163
      %s166 = sadd.s32 %s165, 1
      %p169 = scmp.eq.s32.totalorder %s21, 1
      %p170 = scmp.ne.s32.totalorder %s165, %s167
      %p171 = scmp.eq.s32.totalorder %s21, 0
      %p172 = por %p170, %p171
      %p173 = scmp.ne.s32.totalorder %s165, %s167
      %p174 = scmp.eq.s32.totalorder %s26, 1
      %p175 = por %p173, %p174
      %p176 = scmp.ne.s32.totalorder %s167, %s168
      %p177 = scmp.eq.s32.totalorder %s26, 0
      %p178 = por %p176, %p177
      %p179 = scmp.ne.s32.totalorder %s167, %s168
      %p180 = scmp.eq.s32.totalorder %s27, 1
      %p181 = por %p179, %p180
      %p183 = scmp.ne.s32.totalorder %s168, %s182
      %p184 = scmp.eq.s32.totalorder %s27, 0
      %p185 = por %p183, %p184
      %s186 = ssub.s32 %s21, %s28
      %p187 = scmp.eq.s32.totalorder %s186, 0
      %s189 = sadd.s32 %s188, 1
      %s190 = scalar_select %p187, %s188, %s189
      %p193 = pneg %p187
      %p194 = scmp.eq.s32.totalorder %s21, 1
      %p195 = por %p193, %p194
      %p196 = scmp.ne.s32.totalorder %s188, %s191
      %p197 = scmp.eq.s32.totalorder %s21, 0
      %p198 = por %p196, %p197
      %p199 = scmp.ne.s32.totalorder %s188, %s191
      %p200 = scmp.eq.s32.totalorder %s26, 1
      %p201 = por %p199, %p200
      %p202 = scmp.ne.s32.totalorder %s191, %s192
      %p203 = scmp.eq.s32.totalorder %s26, 0
      %p204 = por %p202, %p203
      %p205 = scmp.ne.s32.totalorder %s191, %s192
      %p206 = scmp.eq.s32.totalorder %s27, 1
      %p207 = por %p205, %p206
      %p209 = scmp.ne.s32.totalorder %s192, %s208
      %p210 = scmp.eq.s32.totalorder %s27, 0
      %p211 = por %p209, %p210
      %s212 = ssub.s32 %s21, %s28
      %p213 = scmp.eq.s32.totalorder %s212, 0
      %s215 = sadd.s32 %s214, 1
      %s216 = scalar_select %p213, %s214, %s215
      %p219 = pneg %p213
      %p220 = scmp.eq.s32.totalorder %s21, 1
      %p221 = por %p219, %p220
      %p222 = scmp.ne.s32.totalorder %s214, %s217
      %p223 = scmp.eq.s32.totalorder %s21, 0
      %p224 = por %p222, %p223
      %p225 = scmp.ne.s32.totalorder %s214, %s217
      %p226 = scmp.eq.s32.totalorder %s26, 1
      %p227 = por %p225, %p226
      %p228 = scmp.ne.s32.totalorder %s217, %s218
      %p229 = scmp.eq.s32.totalorder %s26, 0
      %p230 = por %p228, %p229
      %p231 = scmp.ne.s32.totalorder %s217, %s218
      %p232 = scmp.eq.s32.totalorder %s27, 1
      %p233 = por %p231, %p232
      %p235 = scmp.ne.s32.totalorder %s218, %s234
      %p236 = scmp.eq.s32.totalorder %s27, 0
      %p237 = por %p235, %p236
      %p238 = scmp.le.s32.totalorder 1, %s21
      %p239 = scmp.lt.s32.totalorder %s21, 3
      %p240 = pnand %p238, %p239
      %p241 = pneg %p240
      // Predicated region
      $region9: #{temporal_attention_forward.1} parent=5 // pred_check
        _
      $region10: #{temporal_attention_forward.1} parent=5 // pred_check_branch
        %243 = sbr.rel (%p240) target = $region12
      $region11: #{temporal_attention_forward.1} parent=5 // pred_region
        %s244 = ssub.s32 %s21, 1
        // Predicated region
        $region13: #{temporal_attention_forward.1} parent=11 // pred_check
          %p245 = pneg %p94
        $region14: #{temporal_attention_forward.1} parent=11 // pred_check_branch
          %247 = sbr.rel (%p245) target = $region16
        $region15: #{temporal_attention_forward.1} parent=11 // pred_region
          _
        $region16: #{temporal_attention_forward.1} parent=11 // pred_fallthru
          _
        // Predicated region
        $region17: #{temporal_attention_forward.1} parent=11 // pred_check
          %p248 = pneg %p115
        $region18: #{temporal_attention_forward.1} parent=11 // pred_check_branch
          %250 = sbr.rel (%p248) target = $region20
        $region19: #{temporal_attention_forward.1} parent=11 // pred_region
          _
        $region20: #{temporal_attention_forward.1} parent=11 // pred_fallthru
          _
        // Predicated region
        $region21: #{temporal_attention_forward.1} parent=11 // pred_check
          %p251 = pneg %p136
        $region22: #{temporal_attention_forward.1} parent=11 // pred_check_branch
          %253 = sbr.rel (%p251) target = $region24
        $region23: #{temporal_attention_forward.1} parent=11 // pred_region
          _
        $region24: #{temporal_attention_forward.1} parent=11 // pred_fallthru
          _
        // Predicated region
        $region25: #{temporal_attention_forward.1} parent=11 // pred_check
          %p254 = pneg %p157
        $region26: #{temporal_attention_forward.1} parent=11 // pred_check_branch
          %256 = sbr.rel (%p254) target = $region28
        $region27: #{temporal_attention_forward.1} parent=11 // pred_region
          _
        $region28: #{temporal_attention_forward.1} parent=11 // pred_fallthru
          _
        // Predicated region
        $region29: #{temporal_attention_forward.1} parent=11 // pred_check
          %p257 = pneg %p178
        $region30: #{temporal_attention_forward.1} parent=11 // pred_check_branch
          %259 = sbr.rel (%p257) target = $region32
        $region31: #{temporal_attention_forward.1} parent=11 // pred_region
          _
        $region32: #{temporal_attention_forward.1} parent=11 // pred_fallthru
          _
      $region12: #{temporal_attention_forward.1} parent=5 // pred_fallthru
        _
      %p260 = scmp.lt.s32.totalorder %s21, 2
      // Predicated region
      $region33: #{temporal_attention_forward.1} parent=5 // pred_check
        %p261 = pneg %p260
      $region34: #{temporal_attention_forward.1} parent=5 // pred_check_branch
        %263 = sbr.rel (%p261) target = $region36
      $region35: #{temporal_attention_forward.1} parent=5 // pred_region
        // Predicated region
        $region37: #{temporal_attention_forward.1} parent=35 // pred_check
          %p264 = pneg %p41
        $region38: #{temporal_attention_forward.1} parent=35 // pred_check_branch
          %266 = sbr.rel (%p264) target = $region40
        $region39: #{temporal_attention_forward.1} parent=35 // pred_region
          %s267 = smul.u32 4, %s21
          %p268 = scmp.lt.s32.totalorder %s267, 7
          %s269 = scalar_select %p268, %s267, 7
          %s270 = smul.addr %s269, 8
          %s271 = scalar_lea.vmem %s0, %s270
          %s272 = smul.u32 4, %s21
        $region40: #{temporal_attention_forward.1} parent=35 // pred_fallthru
          _
        // Predicated region
        $region41: #{temporal_attention_forward.1} parent=35 // pred_check
          %p273 = pneg %p67
        $region42: #{temporal_attention_forward.1} parent=35 // pred_check_branch
          %275 = sbr.rel (%p273) target = $region44
        $region43: #{temporal_attention_forward.1} parent=35 // pred_region
          %s276 = smul.u32 4, %s21
          %p277 = scmp.lt.s32.totalorder %s276, 7
          %s278 = scalar_select %p277, %s276, 7
          %s279 = smul.addr %s278, 8
          %s280 = scalar_lea.vmem %s1, %s279
          %s281 = smul.u32 4, %s21
        $region44: #{temporal_attention_forward.1} parent=35 // pred_fallthru
          _
      $region36: #{temporal_attention_forward.1} parent=5 // pred_fallthru
        _
      %p282 = scmp.le.s32.totalorder 1, %s21
      %p283 = scmp.lt.s32.totalorder %s21, 3
      %p284 = pnand %p282, %p283
      %p285 = pneg %p284
      // Predicated region
      $region45: #{temporal_attention_forward.1} parent=5 // pred_check
        _
      $region46: #{temporal_attention_forward.1} parent=5 // pred_check_branch
        %287 = sbr.rel (%p284) target = $region48
      $region47: #{temporal_attention_forward.1} parent=5 // pred_region
        %s288 = ssub.s32 %s21, 1
        %s289 = smul.u32 4, %s26
        %p290 = scmp.lt.s32.totalorder %s289, 7
        %s291 = scalar_select %p290, %s289, 7
        %s292 = smul.addr %s291, 8
        %s293 = scalar_lea.vmem %s0, %s292
        %p294 = pneg %p47
        %p295 = pneg %p44
        %s296 = smul.u32 4, %s26
        %p297 = scmp.lt.s32.totalorder %s296, 7
        %s298 = scalar_select %p297, %s296, 7
        %s299 = smul.addr %s298, 8
        %s300 = scalar_lea.vmem %s1, %s299
        %p301 = pneg %p73
        %p302 = pneg %p70
        %p303 = pneg %p94
        %p304 = pneg %p91
        %p305 = pneg %p115
        %p306 = pneg %p112
        %p307 = pneg %p136
        %p308 = pneg %p133
        %p309 = pneg %p157
        %p310 = pneg %p154
        %p311 = pneg %p178
        %p312 = pneg %p175
        %p313 = pneg %p204
        %p314 = pneg %p201
        %s315 = sand.u32 %s191, 1
        %s316 = scalar_lea.sflag [#allocation4], %s315
        %s317 = sand.u32 %s191, 1
        %s318 = smul.addr %s317, 4
        %s319 = scalar_lea.vmem [#allocation3], %s318
        %p320 = pneg %p230
        %p321 = pneg %p227
        %s322 = sand.u32 %s217, 1
        %s323 = scalar_lea.sflag [#allocation6], %s322
        %s324 = sand.u32 %s217, 1
        %s325 = smul.addr %s324, 32
        %s326 = scalar_lea.vmem [#allocation5], %s325
        %s327 = smul.u32 4, %s26
        %p328 = scmp.lt.s32.totalorder %s327, 7
        %s329 = scalar_select %p328, %s327, 7
        %s330 = smul.addr %s329, 8
        %s331 = scalar_lea.vmem %s0, %s330
        %s332 = smul.u32 4, %s26
        %s333 = smul.u32 4, %s26
        %p334 = scmp.lt.s32.totalorder %s333, 7
        %s335 = scalar_select %p334, %s333, 7
        %s336 = smul.addr %s335, 8
        %s337 = scalar_lea.vmem %s1, %s336
        %s338 = smul.u32 4, %s26
        %s339 = smul.u32 4, %s26
        %s340 = smul.u32 4, %s26
        %v342 = vld [vmem:[%s331] sm:$0xff]
        %v343 = vld [vmem:[%s331 + $0x8] sm:$0xff]
        %v344 = vld [vmem:[%s331 + $0x10] sm:$0xff]
        %v345 = vld [vmem:[%s331 + $0x18] sm:$0xff]
        %v346 = vld [vmem:[%s2] sm:$0xff]
        %v347 = vadd.f32 %v342, %v346
        %v348 = vadd.f32 %v343, %v346
        %v349 = vadd.f32 %v344, %v346
        %v350 = vadd.f32 %v345, %v346
        %v351 = vpack.c.bf16 %v348, %v347
        %v352 = vpack.c.bf16 %v350, %v349
        %v353 = vld [vmem:[%s337] sm:$0xff]
        %v354 = vld [vmem:[%s337 + $0x8] sm:$0xff]
        %v355 = vld [vmem:[%s337 + $0x10] sm:$0xff]
        %v356 = vld [vmem:[%s337 + $0x18] sm:$0xff]
        %v357 = vpack.c.bf16 %v354, %v353
        %v358 = vpack.c.bf16 %v356, %v355
        %v359 = vld [vmem:[%s3] sm:$0xf]
        %v360 = vld [vmem:[%s3 + $0x4] sm:$0xf]
        %v361 = vld [vmem:[%s3 + $0x8] sm:$0xf]
        %v362 = vld [vmem:[%s3 + $0xc] sm:$0xf]
        %v367 = vunpack.c.l.b16 %v359
        %v368 = vunpack.c.l.b16 %v360
        %v369 = vunpack.c.l.b16 %v361
        %v370 = vunpack.c.l.b16 %v362
        %v371 = vpack.c.b16 %v368, %v367
        %v372 = vpack.c.b16 %v370, %v369
        %vm375 = vcmask 261120
        %v377 = vsel %vm375, %v351, 0
        %v380 = vsel %vm375, %v352, 0
        %382 = vmatprep.subr.bf16.mxu0 0
        %383 = vmatpush1.bf16.msra.mxu0 %v371
        %384 = vmatprep.subr.bf16.mxu0 0
        %385 = vmatpush1.bf16.msra.mxu0 %v372
        %386 = vmatprep.subr.bf16.mxu0 0
        %387 = vmatpush1.bf16.msra.mxu0 0
        %388 = vmatprep.subr.bf16.mxu0 0
        %389 = vmatpush1.bf16.msra.mxu0 0
        %390 = vmatprep.subr.bf16.mxu0 0
        %391 = vmatpush1.bf16.msra.mxu0 0
        %392 = vmatprep.subr.bf16.mxu0 0
        %393 = vmatpush1.bf16.msra.mxu0 0
        %394 = vmatprep.subr.bf16.mxu0 0
        %395 = vmatpush1.bf16.msra.mxu0 0
        %396 = vmatprep.subr.bf16.mxu0 0
        %397 = vmatpush1.bf16.msra.mxu0 0
        %398 = vmatprep.subr.bf16.mxu0 0
        %399 = vmatpush1.bf16.msra.mxu0 0
        %400 = vmatprep.subr.bf16.mxu0 0
        %401 = vmatpush1.bf16.msra.mxu0 0
        %402 = vmatprep.subr.bf16.mxu0 0
        %403 = vmatpush1.bf16.msra.mxu0 0
        %404 = vmatprep.subr.bf16.mxu0 0
        %405 = vmatpush1.bf16.msra.mxu0 0
        %406 = vmatprep.subr.bf16.mxu0 0
        %407 = vmatpush1.bf16.msra.mxu0 0
        %408 = vmatprep.subr.bf16.mxu0 0
        %409 = vmatpush1.bf16.msra.mxu0 0
        %410 = vmatprep.subr.bf16.mxu0 0
        %411 = vmatpush1.bf16.msra.mxu0 0
        %412 = vmatprep.subr.bf16.mxu0 0
        %413 = vmatpush1.bf16.msra.mxu0 0
        %414 = vmatprep.mubr.bf16.mxu0 0
        %415 = vmatmul.mubr.bf16.gmra.mrb[0].mxu0 %v377
        %v416 = vpop.f32.mrb[0].mxu0
        %v417 = vadd.f32 0.0, %v416
        %v418 = vpop.f32.mrb[0].mxu0
        %v419 = vpop.f32.mrb[0].mxu0
        %v420 = vadd.f32 0.0, %v419
        %v421 = vpop.f32.mrb[0].mxu0
        %422 = vmatprep.mubr.bf16.mxu0 0
        %423 = vmatmul.mubr.bf16.gmra.mrb[0].mxu0 %v380
        %v424 = vpop.f32.mrb[0].mxu0
        %v425 = vadd.f32 0.0, %v424
        %v426 = vpop.f32.mrb[0].mxu0
        %v427 = vpop.f32.mrb[0].mxu0
        %v428 = vadd.f32 0.0, %v427
        %v429 = vpop.f32.mrb[0].mxu0
        %430 = vdwg.mxu0
        %v431 = vld [vmem:[%s4] sm:$0xf]
        %v432 = vld [vmem:[%s4 + $0x4] sm:$0xf]
        %v433 = vld [vmem:[%s4 + $0x8] sm:$0xf]
        %v434 = vld [vmem:[%s4 + $0xc] sm:$0xf]
        %v439 = vunpack.c.l.b16 %v431
        %v440 = vunpack.c.l.b16 %v432
        %v441 = vunpack.c.l.b16 %v433
        %v442 = vunpack.c.l.b16 %v434
        %v443 = vpack.c.b16 %v440, %v439
        %v444 = vpack.c.b16 %v442, %v441
        %v448 = vsel %vm375, %v357, 0
        %v451 = vsel %vm375, %v358, 0
        %453 = vmatprep.subr.bf16.mxu0 0
        %454 = vmatpush1.bf16.msra.mxu0 %v443
        %455 = vmatprep.subr.bf16.mxu0 0
        %456 = vmatpush1.bf16.msra.mxu0 %v444
        %457 = vmatprep.subr.bf16.mxu0 0
        %458 = vmatpush1.bf16.msra.mxu0 0
        %459 = vmatprep.subr.bf16.mxu0 0
        %460 = vmatpush1.bf16.msra.mxu0 0
        %461 = vmatprep.subr.bf16.mxu0 0
        %462 = vmatpush1.bf16.msra.mxu0 0
        %463 = vmatprep.subr.bf16.mxu0 0
        %464 = vmatpush1.bf16.msra.mxu0 0
        %465 = vmatprep.subr.bf16.mxu0 0
        %466 = vmatpush1.bf16.msra.mxu0 0
        %467 = vmatprep.subr.bf16.mxu0 0
        %468 = vmatpush1.bf16.msra.mxu0 0
        %469 = vmatprep.subr.bf16.mxu0 0
        %470 = vmatpush1.bf16.msra.mxu0 0
        %471 = vmatprep.subr.bf16.mxu0 0
        %472 = vmatpush1.bf16.msra.mxu0 0
        %473 = vmatprep.subr.bf16.mxu0 0
        %474 = vmatpush1.bf16.msra.mxu0 0
        %475 = vmatprep.subr.bf16.mxu0 0
        %476 = vmatpush1.bf16.msra.mxu0 0
        %477 = vmatprep.subr.bf16.mxu0 0
        %478 = vmatpush1.bf16.msra.mxu0 0
        %479 = vmatprep.subr.bf16.mxu0 0
        %480 = vmatpush1.bf16.msra.mxu0 0
        %481 = vmatprep.subr.bf16.mxu0 0
        %482 = vmatpush1.bf16.msra.mxu0 0
        %483 = vmatprep.subr.bf16.mxu0 0
        %484 = vmatpush1.bf16.msra.mxu0 0
        %485 = vmatprep.mubr.bf16.mxu0 0
        %486 = vmatmul.mubr.bf16.gmra.mrb[0].mxu0 %v448
        %v487 = vpop.f32.mrb[0].mxu0
        %v488 = vadd.f32 0.0, %v487
        %v489 = vpop.f32.mrb[0].mxu0
        %v490 = vpop.f32.mrb[0].mxu0
        %v491 = vadd.f32 0.0, %v490
        %v492 = vpop.f32.mrb[0].mxu0
        %493 = vmatprep.mubr.bf16.mxu0 0
        %494 = vmatmul.mubr.bf16.gmra.mrb[0].mxu0 %v451
        %v495 = vpop.f32.mrb[0].mxu0
        %v496 = vadd.f32 0.0, %v495
        %v497 = vpop.f32.mrb[0].mxu0
        %v498 = vpop.f32.mrb[0].mxu0
        %v499 = vadd.f32 0.0, %v498
        %v500 = vpop.f32.mrb[0].mxu0
        %501 = vdwg.mxu0
        %v502 = vpack.c.bf16 %v417, %v417
        %v503 = vpack.c.bf16 %v420, %v420
        %v504 = vpack.c.bf16 %v425, %v425
        %v505 = vpack.c.bf16 %v428, %v428
        %v506 = vpack.c.bf16 %v488, %v488
        %v507 = vpack.c.bf16 %v491, %v491
        %v508 = vpack.c.bf16 %v496, %v496
        %v509 = vpack.c.bf16 %v499, %v499
        %vm510 = vcmask 64512
        %v512 = vsel %vm510, %v502, 0
        %v515 = vsel %vm510, %v506, 0
        %517 = vmatprep.subr.bf16.mxu0 0
        %518 = vmatpush1.bf16.xpose.msra.mxu0 %v515
        %519 = vmatprep.subr.bf16.mxu0 0
        %520 = vmatpush1.bf16.xpose.msra.mxu0 0
        %521 = vmatprep.subr.bf16.mxu0 0
        %522 = vmatpush1.bf16.xpose.msra.mxu0 0
        %523 = vmatprep.subr.bf16.mxu0 0
        %524 = vmatpush1.bf16.xpose.msra.mxu0 0
        %525 = vmatprep.subr.bf16.mxu0 0
        %526 = vmatpush1.bf16.xpose.msra.mxu0 0
        %527 = vmatprep.subr.bf16.mxu0 0
        %528 = vmatpush1.bf16.xpose.msra.mxu0 0
        %529 = vmatprep.subr.bf16.mxu0 0
        %530 = vmatpush1.bf16.xpose.msra.mxu0 0
        %531 = vmatprep.subr.bf16.mxu0 0
        %532 = vmatpush1.bf16.xpose.msra.mxu0 0
        %533 = vmatprep.subr.bf16.mxu0 0
        %534 = vmatpush1.bf16.xpose.msra.mxu0 0
        %535 = vmatprep.subr.bf16.mxu0 0
        %536 = vmatpush1.bf16.xpose.msra.mxu0 0
        %537 = vmatprep.subr.bf16.mxu0 0
        %538 = vmatpush1.bf16.xpose.msra.mxu0 0
        %539 = vmatprep.subr.bf16.mxu0 0
        %540 = vmatpush1.bf16.xpose.msra.mxu0 0
        %541 = vmatprep.subr.bf16.mxu0 0
        %542 = vmatpush1.bf16.xpose.msra.mxu0 0
        %543 = vmatprep.subr.bf16.mxu0 0
        %544 = vmatpush1.bf16.xpose.msra.mxu0 0
        %545 = vmatprep.subr.bf16.mxu0 0
        %546 = vmatpush1.bf16.xpose.msra.mxu0 0
        %547 = vmatprep.subr.bf16.mxu0 0
        %548 = vmatpush1.bf16.xpose.msra.mxu0 0
        %549 = vmatprep.mubr.bf16.mxu0 0
        %550 = vmatmul.mubr.bf16.gmra.mrb[0].mxu0 %v512
        %v551 = vpop.f32.mrb[0].mxu0
        %v552 = vadd.f32 0.0, %v551
        %v553 = vpop.f32.mrb[0].mxu0
        %v554 = vpop.f32.mrb[0].mxu0
        %v555 = vpop.f32.mrb[0].mxu0
        %556 = vdwg.mxu0
        %v558 = vsel %vm510, %v503, 0
        %v561 = vsel %vm510, %v507, 0
        %563 = vmatprep.subr.bf16.mxu0 0
        %564 = vmatpush1.bf16.xpose.msra.mxu0 %v561
        %565 = vmatprep.subr.bf16.mxu0 0
        %566 = vmatpush1.bf16.xpose.msra.mxu0 0
        %567 = vmatprep.subr.bf16.mxu0 0
        %568 = vmatpush1.bf16.xpose.msra.mxu0 0
        %569 = vmatprep.subr.bf16.mxu0 0
        %570 = vmatpush1.bf16.xpose.msra.mxu0 0
        %571 = vmatprep.subr.bf16.mxu0 0
        %572 = vmatpush1.bf16.xpose.msra.mxu0 0
        %573 = vmatprep.subr.bf16.mxu0 0
        %574 = vmatpush1.bf16.xpose.msra.mxu0 0
        %575 = vmatprep.subr.bf16.mxu0 0
        %576 = vmatpush1.bf16.xpose.msra.mxu0 0
        %577 = vmatprep.subr.bf16.mxu0 0
        %578 = vmatpush1.bf16.xpose.msra.mxu0 0
        %579 = vmatprep.subr.bf16.mxu0 0
        %580 = vmatpush1.bf16.xpose.msra.mxu0 0
        %581 = vmatprep.subr.bf16.mxu0 0
        %582 = vmatpush1.bf16.xpose.msra.mxu0 0
        %583 = vmatprep.subr.bf16.mxu0 0
        %584 = vmatpush1.bf16.xpose.msra.mxu0 0
        %585 = vmatprep.subr.bf16.mxu0 0
        %586 = vmatpush1.bf16.xpose.msra.mxu0 0
        %587 = vmatprep.subr.bf16.mxu0 0
        %588 = vmatpush1.bf16.xpose.msra.mxu0 0
        %589 = vmatprep.subr.bf16.mxu0 0
        %590 = vmatpush1.bf16.xpose.msra.mxu0 0
        %591 = vmatprep.subr.bf16.mxu0 0
        %592 = vmatpush1.bf16.xpose.msra.mxu0 0
        %593 = vmatprep.subr.bf16.mxu0 0
        %594 = vmatpush1.bf16.xpose.msra.mxu0 0
        %595 = vmatprep.mubr.bf16.mxu0 0
        %596 = vmatmul.mubr.bf16.gmra.mrb[0].mxu0 %v558
        %v597 = vpop.f32.mrb[0].mxu0
        %v598 = vadd.f32 0.0, %v597
        %v599 = vpop.f32.mrb[0].mxu0
        %v600 = vpop.f32.mrb[0].mxu0
        %v601 = vpop.f32.mrb[0].mxu0
        %602 = vdwg.mxu0
        %v604 = vsel %vm510, %v504, 0
        %v607 = vsel %vm510, %v508, 0
        %609 = vmatprep.subr.bf16.mxu0 0
        %610 = vmatpush1.bf16.xpose.msra.mxu0 %v607
        %611 = vmatprep.subr.bf16.mxu0 0
        %612 = vmatpush1.bf16.xpose.msra.mxu0 0
        %613 = vmatprep.subr.bf16.mxu0 0
        %614 = vmatpush1.bf16.xpose.msra.mxu0 0
        %615 = vmatprep.subr.bf16.mxu0 0
        %616 = vmatpush1.bf16.xpose.msra.mxu0 0
        %617 = vmatprep.subr.bf16.mxu0 0
        %618 = vmatpush1.bf16.xpose.msra.mxu0 0
        %619 = vmatprep.subr.bf16.mxu0 0
        %620 = vmatpush1.bf16.xpose.msra.mxu0 0
        %621 = vmatprep.subr.bf16.mxu0 0
        %622 = vmatpush1.bf16.xpose.msra.mxu0 0
        %623 = vmatprep.subr.bf16.mxu0 0
        %624 = vmatpush1.bf16.xpose.msra.mxu0 0
        %625 = vmatprep.subr.bf16.mxu0 0
        %626 = vmatpush1.bf16.xpose.msra.mxu0 0
        %627 = vmatprep.subr.bf16.mxu0 0
        %628 = vmatpush1.bf16.xpose.msra.mxu0 0
        %629 = vmatprep.subr.bf16.mxu0 0
        %630 = vmatpush1.bf16.xpose.msra.mxu0 0
        %631 = vmatprep.subr.bf16.mxu0 0
        %632 = vmatpush1.bf16.xpose.msra.mxu0 0
        %633 = vmatprep.subr.bf16.mxu0 0
        %634 = vmatpush1.bf16.xpose.msra.mxu0 0
        %635 = vmatprep.subr.bf16.mxu0 0
        %636 = vmatpush1.bf16.xpose.msra.mxu0 0
        %637 = vmatprep.subr.bf16.mxu0 0
        %638 = vmatpush1.bf16.xpose.msra.mxu0 0
        %639 = vmatprep.subr.bf16.mxu0 0
        %640 = vmatpush1.bf16.xpose.msra.mxu0 0
        %641 = vmatprep.mubr.bf16.mxu0 0
        %642 = vmatmul.mubr.bf16.gmra.mrb[0].mxu0 %v604
        %v643 = vpop.f32.mrb[0].mxu0
        %v644 = vadd.f32 0.0, %v643
        %v645 = vpop.f32.mrb[0].mxu0
        %v646 = vpop.f32.mrb[0].mxu0
        %v647 = vpop.f32.mrb[0].mxu0
        %648 = vdwg.mxu0
        %v650 = vsel %vm510, %v505, 0
        %v653 = vsel %vm510, %v509, 0
        %655 = vmatprep.subr.bf16.mxu0 0
        %656 = vmatpush1.bf16.xpose.msra.mxu0 %v653
        %657 = vmatprep.subr.bf16.mxu0 0
        %658 = vmatpush1.bf16.xpose.msra.mxu0 0
        %659 = vmatprep.subr.bf16.mxu0 0
        %660 = vmatpush1.bf16.xpose.msra.mxu0 0
        %661 = vmatprep.subr.bf16.mxu0 0
        %662 = vmatpush1.bf16.xpose.msra.mxu0 0
        %663 = vmatprep.subr.bf16.mxu0 0
        %664 = vmatpush1.bf16.xpose.msra.mxu0 0
        %665 = vmatprep.subr.bf16.mxu0 0
        %666 = vmatpush1.bf16.xpose.msra.mxu0 0
        %667 = vmatprep.subr.bf16.mxu0 0
        %668 = vmatpush1.bf16.xpose.msra.mxu0 0
        %669 = vmatprep.subr.bf16.mxu0 0
        %670 = vmatpush1.bf16.xpose.msra.mxu0 0
        %671 = vmatprep.subr.bf16.mxu0 0
        %672 = vmatpush1.bf16.xpose.msra.mxu0 0
        %673 = vmatprep.subr.bf16.mxu0 0
        %674 = vmatpush1.bf16.xpose.msra.mxu0 0
        %675 = vmatprep.subr.bf16.mxu0 0
        %676 = vmatpush1.bf16.xpose.msra.mxu0 0
        %677 = vmatprep.subr.bf16.mxu0 0
        %678 = vmatpush1.bf16.xpose.msra.mxu0 0
        %679 = vmatprep.subr.bf16.mxu0 0
        %680 = vmatpush1.bf16.xpose.msra.mxu0 0
        %681 = vmatprep.subr.bf16.mxu0 0
        %682 = vmatpush1.bf16.xpose.msra.mxu0 0
        %683 = vmatprep.subr.bf16.mxu0 0
        %684 = vmatpush1.bf16.xpose.msra.mxu0 0
        %685 = vmatprep.subr.bf16.mxu0 0
        %686 = vmatpush1.bf16.xpose.msra.mxu0 0
        %687 = vmatprep.mubr.bf16.mxu0 0
        %688 = vmatmul.mubr.bf16.gmra.mrb[0].mxu0 %v650
        %v689 = vpop.f32.mrb[0].mxu0
        %v690 = vadd.f32 0.0, %v689
        %v691 = vpop.f32.mrb[0].mxu0
        %v692 = vpop.f32.mrb[0].mxu0
        %v693 = vpop.f32.mrb[0].mxu0
        %694 = vdwg.mxu0
        %v695 = vmul.f32 %v552, 0.35355338
        %v696 = vmul.f32 %v598, 0.35355338
        %v697 = vmul.f32 %v644, 0.35355338
        %v698 = vmul.f32 %v690, 0.35355338
        %v699 = vsel %vm510, %v695, -inf
        %700 = vmax.xlane.f32.xlu0 %v699
        %v701 = vpop.xlane.xlu0 %700
        %v702 = vsel %vm510, %v696, -inf
        %703 = vmax.xlane.f32.xlu0 %v702
        %v704 = vpop.xlane.xlu0 %703
        %v705 = vsel %vm510, %v697, -inf
        %706 = vmax.xlane.f32.xlu0 %v705
        %v707 = vpop.xlane.xlu0 %706
        %v708 = vsel %vm510, %v698, -inf
        %709 = vmax.xlane.f32.xlu0 %v708
        %v710 = vpop.xlane.xlu0 %709
        %v711 = vsub.f32 %v695, %v701
        %v712 = vsub.f32 %v696, %v704
        %v713 = vsub.f32 %v697, %v707
        %v714 = vsub.f32 %v698, %v710
        %v715 = vmul.f32 %v711, 1.442695
        %v716 = vpow.pop %v715
        %v717 = vmul.f32 %v712, 1.442695
        %v718 = vpow.pop %v717
        %v719 = vmul.f32 %v713, 1.442695
        %v720 = vpow.pop %v719
        %v721 = vmul.f32 %v714, 1.442695
        %v722 = vpow.pop %v721
        %v723 = vsel %vm510, %v716, 0.0
        %724 = vadd.xlane.f32.xlu0 %v723
        %v725 = vpop.xlane.xlu0 %724
        %v726 = vsel %vm510, %v718, 0.0
        %727 = vadd.xlane.f32.xlu0 %v726
        %v728 = vpop.xlane.xlu0 %727
        %v729 = vsel %vm510, %v720, 0.0
        %730 = vadd.xlane.f32.xlu0 %v729
        %v731 = vpop.xlane.xlu0 %730
        %v732 = vsel %vm510, %v722, 0.0
        %733 = vadd.xlane.f32.xlu0 %v732
        %v734 = vpop.xlane.xlu0 %733
        %v735 = vrcp.pop %v725
        %v736 = vrcp.pop %v728
        %v737 = vrcp.pop %v731
        %v738 = vrcp.pop %v734
        %v739 = vmul.f32 %v716, %v735
        %v740 = vmul.f32 %v718, %v736
        %v741 = vmul.f32 %v720, %v737
        %v742 = vmul.f32 %v722, %v738
        %743 = vst.msk [vmem:[%s326] sm:$0xff] %vm510, %v739
        %744 = vst.msk [vmem:[%s326 + $0x8] sm:$0xff] %vm510, %v740
        %745 = vst.msk [vmem:[%s326 + $0x10] sm:$0xff] %vm510, %v741
        %746 = vst.msk [vmem:[%s326 + $0x18] sm:$0xff] %vm510, %v742
        %v747 = vpack.c.bf16 %v739, %v739
        %v748 = vpack.c.bf16 %v740, %v740
        %v749 = vpack.c.bf16 %v741, %v741
        %v750 = vpack.c.bf16 %v742, %v742
        %752 = vrot.lane.b32.xlu0 %v502, 96
        %v753 = vpop.permute.xlu0 %752
        %v755 = vsel %vm510, %v747, 0
        %vm757 = vcmask 1043456
        %v759 = vsel %vm757, %v753, 0
        %761 = vmatprep.subr.bf16.mxu0 0
        %762 = vmatpush1.bf16.msra.mxu0 %v759
        %763 = vmatprep.subr.bf16.mxu0 0
        %764 = vmatpush1.bf16.msra.mxu0 0
        %765 = vmatprep.subr.bf16.mxu0 0
        %766 = vmatpush1.bf16.msra.mxu0 0
        %767 = vmatprep.subr.bf16.mxu0 0
        %768 = vmatpush1.bf16.msra.mxu0 0
        %769 = vmatprep.subr.bf16.mxu0 0
        %770 = vmatpush1.bf16.msra.mxu0 0
        %771 = vmatprep.subr.bf16.mxu0 0
        %772 = vmatpush1.bf16.msra.mxu0 0
        %773 = vmatprep.subr.bf16.mxu0 0
        %774 = vmatpush1.bf16.msra.mxu0 0
        %775 = vmatprep.subr.bf16.mxu0 0
        %776 = vmatpush1.bf16.msra.mxu0 0
        %777 = vmatprep.subr.bf16.mxu0 0
        %778 = vmatpush1.bf16.msra.mxu0 0
        %779 = vmatprep.subr.bf16.mxu0 0
        %780 = vmatpush1.bf16.msra.mxu0 0
        %781 = vmatprep.subr.bf16.mxu0 0
        %782 = vmatpush1.bf16.msra.mxu0 0
        %783 = vmatprep.subr.bf16.mxu0 0
        %784 = vmatpush1.bf16.msra.mxu0 0
        %785 = vmatprep.subr.bf16.mxu0 0
        %786 = vmatpush1.bf16.msra.mxu0 0
        %787 = vmatprep.subr.bf16.mxu0 0
        %788 = vmatpush1.bf16.msra.mxu0 0
        %789 = vmatprep.subr.bf16.mxu0 0
        %790 = vmatpush1.bf16.msra.mxu0 0
        %791 = vmatprep.subr.bf16.mxu0 0
        %792 = vmatpush1.bf16.msra.mxu0 0
        %793 = vmatprep.mubr.bf16.mxu0 0
        %794 = vmatmul.mubr.bf16.gmra.mrb[0].mxu0 %v755
        %v795 = vpop.f32.mrb[0].mxu0
        %v796 = vadd.f32 0.0, %v795
        %v797 = vpop.f32.mrb[0].mxu0
        %v798 = vpop.f32.mrb[0].mxu0
        %v799 = vpop.f32.mrb[0].mxu0
        %800 = vdwg.mxu0
        %802 = vrot.lane.b32.xlu0 %v503, 96
        %v803 = vpop.permute.xlu0 %802
        %v805 = vsel %vm510, %v748, 0
        %v808 = vsel %vm757, %v803, 0
        %810 = vmatprep.subr.bf16.mxu0 0
        %811 = vmatpush1.bf16.msra.mxu0 %v808
        %812 = vmatprep.subr.bf16.mxu0 0
        %813 = vmatpush1.bf16.msra.mxu0 0
        %814 = vmatprep.subr.bf16.mxu0 0
        %815 = vmatpush1.bf16.msra.mxu0 0
        %816 = vmatprep.subr.bf16.mxu0 0
        %817 = vmatpush1.bf16.msra.mxu0 0
        %818 = vmatprep.subr.bf16.mxu0 0
        %819 = vmatpush1.bf16.msra.mxu0 0
        %820 = vmatprep.subr.bf16.mxu0 0
        %821 = vmatpush1.bf16.msra.mxu0 0
        %822 = vmatprep.subr.bf16.mxu0 0
        %823 = vmatpush1.bf16.msra.mxu0 0
        %824 = vmatprep.subr.bf16.mxu0 0
        %825 = vmatpush1.bf16.msra.mxu0 0
        %826 = vmatprep.subr.bf16.mxu0 0
        %827 = vmatpush1.bf16.msra.mxu0 0
        %828 = vmatprep.subr.bf16.mxu0 0
        %829 = vmatpush1.bf16.msra.mxu0 0
        %830 = vmatprep.subr.bf16.mxu0 0
        %831 = vmatpush1.bf16.msra.mxu0 0
        %832 = vmatprep.subr.bf16.mxu0 0
        %833 = vmatpush1.bf16.msra.mxu0 0
        %834 = vmatprep.subr.bf16.mxu0 0
        %835 = vmatpush1.bf16.msra.mxu0 0
        %836 = vmatprep.subr.bf16.mxu0 0
        %837 = vmatpush1.bf16.msra.mxu0 0
        %838 = vmatprep.subr.bf16.mxu0 0
        %839 = vmatpush1.bf16.msra.mxu0 0
        %840 = vmatprep.subr.bf16.mxu0 0
        %841 = vmatpush1.bf16.msra.mxu0 0
        %842 = vmatprep.mubr.bf16.mxu0 0
        %843 = vmatmul.mubr.bf16.gmra.mrb[0].mxu0 %v805
        %v844 = vpop.f32.mrb[0].mxu0
        %v845 = vadd.f32 0.0, %v844
        %v846 = vpop.f32.mrb[0].mxu0
        %v847 = vpop.f32.mrb[0].mxu0
        %v848 = vpop.f32.mrb[0].mxu0
        %849 = vdwg.mxu0
        %851 = vrot.lane.b32.xlu0 %v504, 96
        %v852 = vpop.permute.xlu0 %851
        %v854 = vsel %vm510, %v749, 0
        %v857 = vsel %vm757, %v852, 0
        %859 = vmatprep.subr.bf16.mxu0 0
        %860 = vmatpush1.bf16.msra.mxu0 %v857
        %861 = vmatprep.subr.bf16.mxu0 0
        %862 = vmatpush1.bf16.msra.mxu0 0
        %863 = vmatprep.subr.bf16.mxu0 0
        %864 = vmatpush1.bf16.msra.mxu0 0
        %865 = vmatprep.subr.bf16.mxu0 0
        %866 = vmatpush1.bf16.msra.mxu0 0
        %867 = vmatprep.subr.bf16.mxu0 0
        %868 = vmatpush1.bf16.msra.mxu0 0
        %869 = vmatprep.subr.bf16.mxu0 0
        %870 = vmatpush1.bf16.msra.mxu0 0
        %871 = vmatprep.subr.bf16.mxu0 0
        %872 = vmatpush1.bf16.msra.mxu0 0
        %873 = vmatprep.subr.bf16.mxu0 0
        %874 = vmatpush1.bf16.msra.mxu0 0
        %875 = vmatprep.subr.bf16.mxu0 0
        %876 = vmatpush1.bf16.msra.mxu0 0
        %877 = vmatprep.subr.bf16.mxu0 0
        %878 = vmatpush1.bf16.msra.mxu0 0
        %879 = vmatprep.subr.bf16.mxu0 0
        %880 = vmatpush1.bf16.msra.mxu0 0
        %881 = vmatprep.subr.bf16.mxu0 0
        %882 = vmatpush1.bf16.msra.mxu0 0
        %883 = vmatprep.subr.bf16.mxu0 0
        %884 = vmatpush1.bf16.msra.mxu0 0
        %885 = vmatprep.subr.bf16.mxu0 0
        %886 = vmatpush1.bf16.msra.mxu0 0
        %887 = vmatprep.subr.bf16.mxu0 0
        %888 = vmatpush1.bf16.msra.mxu0 0
        %889 = vmatprep.subr.bf16.mxu0 0
        %890 = vmatpush1.bf16.msra.mxu0 0
        %891 = vmatprep.mubr.bf16.mxu0 0
        %892 = vmatmul.mubr.bf16.gmra.mrb[0].mxu0 %v854
        %v893 = vpop.f32.mrb[0].mxu0
        %v894 = vadd.f32 0.0, %v893
        %v895 = vpop.f32.mrb[0].mxu0
        %v896 = vpop.f32.mrb[0].mxu0
        %v897 = vpop.f32.mrb[0].mxu0
        %898 = vdwg.mxu0
        %900 = vrot.lane.b32.xlu0 %v505, 96
        %v901 = vpop.permute.xlu0 %900
        %v903 = vsel %vm510, %v750, 0
        %v906 = vsel %vm757, %v901, 0
        %908 = vmatprep.subr.bf16.mxu0 0
        %909 = vmatpush1.bf16.msra.mxu0 %v906
        %910 = vmatprep.subr.bf16.mxu0 0
        %911 = vmatpush1.bf16.msra.mxu0 0
        %912 = vmatprep.subr.bf16.mxu0 0
        %913 = vmatpush1.bf16.msra.mxu0 0
        %914 = vmatprep.subr.bf16.mxu0 0
        %915 = vmatpush1.bf16.msra.mxu0 0
        %916 = vmatprep.subr.bf16.mxu0 0
        %917 = vmatpush1.bf16.msra.mxu0 0
        %918 = vmatprep.subr.bf16.mxu0 0
        %919 = vmatpush1.bf16.msra.mxu0 0
        %920 = vmatprep.subr.bf16.mxu0 0
        %921 = vmatpush1.bf16.msra.mxu0 0
        %922 = vmatprep.subr.bf16.mxu0 0
        %923 = vmatpush1.bf16.msra.mxu0 0
        %924 = vmatprep.subr.bf16.mxu0 0
        %925 = vmatpush1.bf16.msra.mxu0 0
        %926 = vmatprep.subr.bf16.mxu0 0
        %927 = vmatpush1.bf16.msra.mxu0 0
        %928 = vmatprep.subr.bf16.mxu0 0
        %929 = vmatpush1.bf16.msra.mxu0 0
        %930 = vmatprep.subr.bf16.mxu0 0
        %931 = vmatpush1.bf16.msra.mxu0 0
        %932 = vmatprep.subr.bf16.mxu0 0
        %933 = vmatpush1.bf16.msra.mxu0 0
        %934 = vmatprep.subr.bf16.mxu0 0
        %935 = vmatpush1.bf16.msra.mxu0 0
        %936 = vmatprep.subr.bf16.mxu0 0
        %937 = vmatpush1.bf16.msra.mxu0 0
        %938 = vmatprep.subr.bf16.mxu0 0
        %939 = vmatpush1.bf16.msra.mxu0 0
        %940 = vmatprep.mubr.bf16.mxu0 0
        %941 = vmatmul.mubr.bf16.gmra.mrb[0].mxu0 %v903
        %v942 = vpop.f32.mrb[0].mxu0
        %v943 = vadd.f32 0.0, %v942
        %v944 = vpop.f32.mrb[0].mxu0
        %v945 = vpop.f32.mrb[0].mxu0
        %v946 = vpop.f32.mrb[0].mxu0
        %947 = vdwg.mxu0
        %948 = vst.msk [vmem:[#allocation2] sm:$0xff] %vm510, %v796
        %949 = vst.msk [vmem:[#allocation2 + $0x8] sm:$0xff] %vm510, %v845
        %950 = vst.msk [vmem:[#allocation2 + $0x10] sm:$0xff] %vm510, %v894
        %951 = vst.msk [vmem:[#allocation2 + $0x18] sm:$0xff] %vm510, %v943
        %952 = vrot.lane.b32.xlu0 %v502, 120
        %v953 = vpop.permute.xlu0 %952
        %955 = vrot.lane.b32.xlu0 %v506, 120
        %v956 = vpop.permute.xlu0 %955
        %v958 = vsel %vm510, %v953, 0
        %v961 = vsel %vm510, %v956, 0
        %963 = vmatprep.subr.bf16.mxu0 0
        %964 = vmatpush1.bf16.xpose.msra.mxu0 %v961
        %965 = vmatprep.subr.bf16.mxu0 0
        %966 = vmatpush1.bf16.xpose.msra.mxu0 0
        %967 = vmatprep.subr.bf16.mxu0 0
        %968 = vmatpush1.bf16.xpose.msra.mxu0 0
        %969 = vmatprep.subr.bf16.mxu0 0
        %970 = vmatpush1.bf16.xpose.msra.mxu0 0
        %971 = vmatprep.subr.bf16.mxu0 0
        %972 = vmatpush1.bf16.xpose.msra.mxu0 0
        %973 = vmatprep.subr.bf16.mxu0 0
        %974 = vmatpush1.bf16.xpose.msra.mxu0 0
        %975 = vmatprep.subr.bf16.mxu0 0
        %976 = vmatpush1.bf16.xpose.msra.mxu0 0
        %977 = vmatprep.subr.bf16.mxu0 0
        %978 = vmatpush1.bf16.xpose.msra.mxu0 0
        %979 = vmatprep.subr.bf16.mxu0 0
        %980 = vmatpush1.bf16.xpose.msra.mxu0 0
        %981 = vmatprep.subr.bf16.mxu0 0
        %982 = vmatpush1.bf16.xpose.msra.mxu0 0
        %983 = vmatprep.subr.bf16.mxu0 0
        %984 = vmatpush1.bf16.xpose.msra.mxu0 0
        %985 = vmatprep.subr.bf16.mxu0 0
        %986 = vmatpush1.bf16.xpose.msra.mxu0 0
        %987 = vmatprep.subr.bf16.mxu0 0
        %988 = vmatpush1.bf16.xpose.msra.mxu0 0
        %989 = vmatprep.subr.bf16.mxu0 0
        %990 = vmatpush1.bf16.xpose.msra.mxu0 0
        %991 = vmatprep.subr.bf16.mxu0 0
        %992 = vmatpush1.bf16.xpose.msra.mxu0 0
        %993 = vmatprep.subr.bf16.mxu0 0
        %994 = vmatpush1.bf16.xpose.msra.mxu0 0
        %995 = vmatprep.mubr.bf16.mxu0 0
        %996 = vmatmul.mubr.bf16.gmra.mrb[0].mxu0 %v958
        %v997 = vpop.f32.mrb[0].mxu0
        %v998 = vadd.f32 0.0, %v997
        %v999 = vpop.f32.mrb[0].mxu0
        %v1000 = vpop.f32.mrb[0].mxu0
        %v1001 = vpop.f32.mrb[0].mxu0
        %1002 = vdwg.mxu0
        %1003 = vrot.lane.b32.xlu0 %v503, 120
        %v1004 = vpop.permute.xlu0 %1003
        %1006 = vrot.lane.b32.xlu0 %v507, 120
        %v1007 = vpop.permute.xlu0 %1006
        %v1009 = vsel %vm510, %v1004, 0
        %v1012 = vsel %vm510, %v1007, 0
        %1014 = vmatprep.subr.bf16.mxu0 0
        %1015 = vmatpush1.bf16.xpose.msra.mxu0 %v1012
        %1016 = vmatprep.subr.bf16.mxu0 0
        %1017 = vmatpush1.bf16.xpose.msra.mxu0 0
        %1018 = vmatprep.subr.bf16.mxu0 0
        %1019 = vmatpush1.bf16.xpose.msra.mxu0 0
        %1020 = vmatprep.subr.bf16.mxu0 0
        %1021 = vmatpush1.bf16.xpose.msra.mxu0 0
        %1022 = vmatprep.subr.bf16.mxu0 0
        %1023 = vmatpush1.bf16.xpose.msra.mxu0 0
        %1024 = vmatprep.subr.bf16.mxu0 0
        %1025 = vmatpush1.bf16.xpose.msra.mxu0 0
        %1026 = vmatprep.subr.bf16.mxu0 0
        %1027 = vmatpush1.bf16.xpose.msra.mxu0 0
        %1028 = vmatprep.subr.bf16.mxu0 0
        %1029 = vmatpush1.bf16.xpose.msra.mxu0 0
        %1030 = vmatprep.subr.bf16.mxu0 0
        %1031 = vmatpush1.bf16.xpose.msra.mxu0 0
        %1032 = vmatprep.subr.bf16.mxu0 0
        %1033 = vmatpush1.bf16.xpose.msra.mxu0 0
        %1034 = vmatprep.subr.bf16.mxu0 0
        %1035 = vmatpush1.bf16.xpose.msra.mxu0 0
        %1036 = vmatprep.subr.bf16.mxu0 0
        %1037 = vmatpush1.bf16.xpose.msra.mxu0 0
        %1038 = vmatprep.subr.bf16.mxu0 0
        %1039 = vmatpush1.bf16.xpose.msra.mxu0 0
        %1040 = vmatprep.subr.bf16.mxu0 0
        %1041 = vmatpush1.bf16.xpose.msra.mxu0 0
        %1042 = vmatprep.subr.bf16.mxu0 0
        %1043 = vmatpush1.bf16.xpose.msra.mxu0 0
        %1044 = vmatprep.subr.bf16.mxu0 0
        %1045 = vmatpush1.bf16.xpose.msra.mxu0 0
        %1046 = vmatprep.mubr.bf16.mxu0 0
        %1047 = vmatmul.mubr.bf16.gmra.mrb[0].mxu0 %v1009
        %v1048 = vpop.f32.mrb[0].mxu0
        %v1049 = vadd.f32 0.0, %v1048
        %v1050 = vpop.f32.mrb[0].mxu0
        %v1051 = vpop.f32.mrb[0].mxu0
        %v1052 = vpop.f32.mrb[0].mxu0
        %1053 = vdwg.mxu0
        %1054 = vrot.lane.b32.xlu0 %v504, 120
        %v1055 = vpop.permute.xlu0 %1054
        %1057 = vrot.lane.b32.xlu0 %v508, 120
        %v1058 = vpop.permute.xlu0 %1057
        %v1060 = vsel %vm510, %v1055, 0
        %v1063 = vsel %vm510, %v1058, 0
        %1065 = vmatprep.subr.bf16.mxu0 0
        %1066 = vmatpush1.bf16.xpose.msra.mxu0 %v1063
        %1067 = vmatprep.subr.bf16.mxu0 0
        %1068 = vmatpush1.bf16.xpose.msra.mxu0 0
        %1069 = vmatprep.subr.bf16.mxu0 0
        %1070 = vmatpush1.bf16.xpose.msra.mxu0 0
        %1071 = vmatprep.subr.bf16.mxu0 0
        %1072 = vmatpush1.bf16.xpose.msra.mxu0 0
        %1073 = vmatprep.subr.bf16.mxu0 0
        %1074 = vmatpush1.bf16.xpose.msra.mxu0 0
        %1075 = vmatprep.subr.bf16.mxu0 0
        %1076 = vmatpush1.bf16.xpose.msra.mxu0 0
        %1077 = vmatprep.subr.bf16.mxu0 0
        %1078 = vmatpush1.bf16.xpose.msra.mxu0 0
        %1079 = vmatprep.subr.bf16.mxu0 0
        %1080 = vmatpush1.bf16.xpose.msra.mxu0 0
        %1081 = vmatprep.subr.bf16.mxu0 0
        %1082 = vmatpush1.bf16.xpose.msra.mxu0 0
        %1083 = vmatprep.subr.bf16.mxu0 0
        %1084 = vmatpush1.bf16.xpose.msra.mxu0 0
        %1085 = vmatprep.subr.bf16.mxu0 0
        %1086 = vmatpush1.bf16.xpose.msra.mxu0 0
        %1087 = vmatprep.subr.bf16.mxu0 0
        %1088 = vmatpush1.bf16.xpose.msra.mxu0 0
        %1089 = vmatprep.subr.bf16.mxu0 0
        %1090 = vmatpush1.bf16.xpose.msra.mxu0 0
        %1091 = vmatprep.subr.bf16.mxu0 0
        %1092 = vmatpush1.bf16.xpose.msra.mxu0 0
        %1093 = vmatprep.subr.bf16.mxu0 0
        %1094 = vmatpush1.bf16.xpose.msra.mxu0 0
        %1095 = vmatprep.subr.bf16.mxu0 0
        %1096 = vmatpush1.bf16.xpose.msra.mxu0 0
        %1097 = vmatprep.mubr.bf16.mxu0 0
        %1098 = vmatmul.mubr.bf16.gmra.mrb[0].mxu0 %v1060
        %v1099 = vpop.f32.mrb[0].mxu0
        %v1100 = vadd.f32 0.0, %v1099
        %v1101 = vpop.f32.mrb[0].mxu0
        %v1102 = vpop.f32.mrb[0].mxu0
        %v1103 = vpop.f32.mrb[0].mxu0
        %1104 = vdwg.mxu0
        %1105 = vrot.lane.b32.xlu0 %v505, 120
        %v1106 = vpop.permute.xlu0 %1105
        %1108 = vrot.lane.b32.xlu0 %v509, 120
        %v1109 = vpop.permute.xlu0 %1108
        %v1111 = vsel %vm510, %v1106, 0
        %v1114 = vsel %vm510, %v1109, 0
        %1116 = vmatprep.subr.bf16.mxu0 0
        %1117 = vmatpush1.bf16.xpose.msra.mxu0 %v1114
        %1118 = vmatprep.subr.bf16.mxu0 0
        %1119 = vmatpush1.bf16.xpose.msra.mxu0 0
        %1120 = vmatprep.subr.bf16.mxu0 0
        %1121 = vmatpush1.bf16.xpose.msra.mxu0 0
        %1122 = vmatprep.subr.bf16.mxu0 0
        %1123 = vmatpush1.bf16.xpose.msra.mxu0 0
        %1124 = vmatprep.subr.bf16.mxu0 0
        %1125 = vmatpush1.bf16.xpose.msra.mxu0 0
        %1126 = vmatprep.subr.bf16.mxu0 0
        %1127 = vmatpush1.bf16.xpose.msra.mxu0 0
        %1128 = vmatprep.subr.bf16.mxu0 0
        %1129 = vmatpush1.bf16.xpose.msra.mxu0 0
        %1130 = vmatprep.subr.bf16.mxu0 0
        %1131 = vmatpush1.bf16.xpose.msra.mxu0 0
        %1132 = vmatprep.subr.bf16.mxu0 0
        %1133 = vmatpush1.bf16.xpose.msra.mxu0 0
        %1134 = vmatprep.subr.bf16.mxu0 0
        %1135 = vmatpush1.bf16.xpose.msra.mxu0 0
        %1136 = vmatprep.subr.bf16.mxu0 0
        %1137 = vmatpush1.bf16.xpose.msra.mxu0 0
        %1138 = vmatprep.subr.bf16.mxu0 0
        %1139 = vmatpush1.bf16.xpose.msra.mxu0 0
        %1140 = vmatprep.subr.bf16.mxu0 0
        %1141 = vmatpush1.bf16.xpose.msra.mxu0 0
        %1142 = vmatprep.subr.bf16.mxu0 0
        %1143 = vmatpush1.bf16.xpose.msra.mxu0 0
        %1144 = vmatprep.subr.bf16.mxu0 0
        %1145 = vmatpush1.bf16.xpose.msra.mxu0 0
        %1146 = vmatprep.subr.bf16.mxu0 0
        %1147 = vmatpush1.bf16.xpose.msra.mxu0 0
        %1148 = vmatprep.mubr.bf16.mxu0 0
        %1149 = vmatmul.mubr.bf16.gmra.mrb[0].mxu0 %v1111
        %v1150 = vpop.f32.mrb[0].mxu0
        %v1151 = vadd.f32 0.0, %v1150
        %v1152 = vpop.f32.mrb[0].mxu0
        %v1153 = vpop.f32.mrb[0].mxu0
        %v1154 = vpop.f32.mrb[0].mxu0
        %1155 = vdwg.mxu0
        %v1156 = vmul.f32 %v998, 0.35355338
        %v1157 = vmul.f32 %v1049, 0.35355338
        %v1158 = vmul.f32 %v1100, 0.35355338
        %v1159 = vmul.f32 %v1151, 0.35355338
        %v1160 = vsel %vm510, %v1156, -inf
        %1161 = vmax.xlane.f32.xlu0 %v1160
        %v1162 = vpop.xlane.xlu0 %1161
        %v1163 = vsel %vm510, %v1157, -inf
        %1164 = vmax.xlane.f32.xlu0 %v1163
        %v1165 = vpop.xlane.xlu0 %1164
        %v1166 = vsel %vm510, %v1158, -inf
        %1167 = vmax.xlane.f32.xlu0 %v1166
        %v1168 = vpop.xlane.xlu0 %1167
        %v1169 = vsel %vm510, %v1159, -inf
        %1170 = vmax.xlane.f32.xlu0 %v1169
        %v1171 = vpop.xlane.xlu0 %1170
        %v1172 = vsub.f32 %v1156, %v1162
        %v1173 = vsub.f32 %v1157, %v1165
        %v1174 = vsub.f32 %v1158, %v1168
        %v1175 = vsub.f32 %v1159, %v1171
        %v1176 = vmul.f32 %v1172, 1.442695
        %v1177 = vpow.pop %v1176
        %v1178 = vmul.f32 %v1173, 1.442695
        %v1179 = vpow.pop %v1178
        %v1180 = vmul.f32 %v1174, 1.442695
        %v1181 = vpow.pop %v1180
        %v1182 = vmul.f32 %v1175, 1.442695
        %v1183 = vpow.pop %v1182
        %v1184 = vsel %vm510, %v1177, 0.0
        %1185 = vadd.xlane.f32.xlu0 %v1184
        %v1186 = vpop.xlane.xlu0 %1185
        %v1187 = vsel %vm510, %v1179, 0.0
        %1188 = vadd.xlane.f32.xlu0 %v1187
        %v1189 = vpop.xlane.xlu0 %1188
        %v1190 = vsel %vm510, %v1181, 0.0
        %1191 = vadd.xlane.f32.xlu0 %v1190
        %v1192 = vpop.xlane.xlu0 %1191
        %v1193 = vsel %vm510, %v1183, 0.0
        %1194 = vadd.xlane.f32.xlu0 %v1193
        %v1195 = vpop.xlane.xlu0 %1194
        %v1196 = vrcp.pop %v1186
        %v1197 = vrcp.pop %v1189
        %v1198 = vrcp.pop %v1192
        %v1199 = vrcp.pop %v1195
        %v1200 = vmul.f32 %v1177, %v1196
        %v1201 = vmul.f32 %v1179, %v1197
        %v1202 = vmul.f32 %v1181, %v1198
        %v1203 = vmul.f32 %v1183, %v1199
        %1208 = vrot.lane.b32.xlu0 %v1200, 8
        %v1209 = vpop.permute.xlu0 %1208
        %1210 = vrot.lane.b32.xlu0 %v1201, 8
        %v1211 = vpop.permute.xlu0 %1210
        %1212 = vrot.lane.b32.xlu0 %v1202, 8
        %v1213 = vpop.permute.xlu0 %1212
        %1214 = vrot.lane.b32.xlu0 %v1203, 8
        %v1215 = vpop.permute.xlu0 %1214
        %vm1220 = vcmask 130112
        %1221 = vst.msk [vmem:[%s326] sm:$0xff] %vm1220, %v1209
        %1222 = vst.msk [vmem:[%s326 + $0x8] sm:$0xff] %vm1220, %v1211
        %1223 = vst.msk [vmem:[%s326 + $0x10] sm:$0xff] %vm1220, %v1213
        %1224 = vst.msk [vmem:[%s326 + $0x18] sm:$0xff] %vm1220, %v1215
        %v1225 = vpack.c.bf16 %v1200, %v1200
        %v1226 = vpack.c.bf16 %v1201, %v1201
        %v1227 = vpack.c.bf16 %v1202, %v1202
        %v1228 = vpack.c.bf16 %v1203, %v1203
        %1229 = vrot.lane.b32.xlu0 %v502, 88
        %v1230 = vpop.permute.xlu0 %1229
        %v1232 = vsel %vm510, %v1225, 0
        %v1235 = vsel %vm757, %v1230, 0
        %1237 = vmatprep.subr.bf16.mxu0 0
        %1238 = vmatpush1.bf16.msra.mxu0 %v1235
        %1239 = vmatprep.subr.bf16.mxu0 0
        %1240 = vmatpush1.bf16.msra.mxu0 0
        %1241 = vmatprep.subr.bf16.mxu0 0
        %1242 = vmatpush1.bf16.msra.mxu0 0
        %1243 = vmatprep.subr.bf16.mxu0 0
        %1244 = vmatpush1.bf16.msra.mxu0 0
        %1245 = vmatprep.subr.bf16.mxu0 0
        %1246 = vmatpush1.bf16.msra.mxu0 0
        %1247 = vmatprep.subr.bf16.mxu0 0
        %1248 = vmatpush1.bf16.msra.mxu0 0
        %1249 = vmatprep.subr.bf16.mxu0 0
        %1250 = vmatpush1.bf16.msra.mxu0 0
        %1251 = vmatprep.subr.bf16.mxu0 0
        %1252 = vmatpush1.bf16.msra.mxu0 0
        %1253 = vmatprep.subr.bf16.mxu0 0
        %1254 = vmatpush1.bf16.msra.mxu0 0
        %1255 = vmatprep.subr.bf16.mxu0 0
        %1256 = vmatpush1.bf16.msra.mxu0 0
        %1257 = vmatprep.subr.bf16.mxu0 0
        %1258 = vmatpush1.bf16.msra.mxu0 0
        %1259 = vmatprep.subr.bf16.mxu0 0
        %1260 = vmatpush1.bf16.msra.mxu0 0
        %1261 = vmatprep.subr.bf16.mxu0 0
        %1262 = vmatpush1.bf16.msra.mxu0 0
        %1263 = vmatprep.subr.bf16.mxu0 0
        %1264 = vmatpush1.bf16.msra.mxu0 0
        %1265 = vmatprep.subr.bf16.mxu0 0
        %1266 = vmatpush1.bf16.msra.mxu0 0
        %1267 = vmatprep.subr.bf16.mxu0 0
        %1268 = vmatpush1.bf16.msra.mxu0 0
        %1269 = vmatprep.mubr.bf16.mxu0 0
        %1270 = vmatmul.mubr.bf16.gmra.mrb[0].mxu0 %v1232
        %v1271 = vpop.f32.mrb[0].mxu0
        %v1272 = vadd.f32 0.0, %v1271
        %v1273 = vpop.f32.mrb[0].mxu0
        %v1274 = vpop.f32.mrb[0].mxu0
        %v1275 = vpop.f32.mrb[0].mxu0
        %1276 = vdwg.mxu0
        %1277 = vrot.lane.b32.xlu0 %v503, 88
        %v1278 = vpop.permute.xlu0 %1277
        %v1280 = vsel %vm510, %v1226, 0
        %v1283 = vsel %vm757, %v1278, 0
        %1285 = vmatprep.subr.bf16.mxu0 0
        %1286 = vmatpush1.bf16.msra.mxu0 %v1283
        %1287 = vmatprep.subr.bf16.mxu0 0
        %1288 = vmatpush1.bf16.msra.mxu0 0
        %1289 = vmatprep.subr.bf16.mxu0 0
        %1290 = vmatpush1.bf16.msra.mxu0 0
        %1291 = vmatprep.subr.bf16.mxu0 0
        %1292 = vmatpush1.bf16.msra.mxu0 0
        %1293 = vmatprep.subr.bf16.mxu0 0
        %1294 = vmatpush1.bf16.msra.mxu0 0
        %1295 = vmatprep.subr.bf16.mxu0 0
        %1296 = vmatpush1.bf16.msra.mxu0 0
        %1297 = vmatprep.subr.bf16.mxu0 0
        %1298 = vmatpush1.bf16.msra.mxu0 0
        %1299 = vmatprep.subr.bf16.mxu0 0
        %1300 = vmatpush1.bf16.msra.mxu0 0
        %1301 = vmatprep.subr.bf16.mxu0 0
        %1302 = vmatpush1.bf16.msra.mxu0 0
        %1303 = vmatprep.subr.bf16.mxu0 0
        %1304 = vmatpush1.bf16.msra.mxu0 0
        %1305 = vmatprep.subr.bf16.mxu0 0
        %1306 = vmatpush1.bf16.msra.mxu0 0
        %1307 = vmatprep.subr.bf16.mxu0 0
        %1308 = vmatpush1.bf16.msra.mxu0 0
        %1309 = vmatprep.subr.bf16.mxu0 0
        %1310 = vmatpush1.bf16.msra.mxu0 0
        %1311 = vmatprep.subr.bf16.mxu0 0
        %1312 = vmatpush1.bf16.msra.mxu0 0
        %1313 = vmatprep.subr.bf16.mxu0 0
        %1314 = vmatpush1.bf16.msra.mxu0 0
        %1315 = vmatprep.subr.bf16.mxu0 0
        %1316 = vmatpush1.bf16.msra.mxu0 0
        %1317 = vmatprep.mubr.bf16.mxu0 0
        %1318 = vmatmul.mubr.bf16.gmra.mrb[0].mxu0 %v1280
        %v1319 = vpop.f32.mrb[0].mxu0
        %v1320 = vadd.f32 0.0, %v1319
        %v1321 = vpop.f32.mrb[0].mxu0
        %v1322 = vpop.f32.mrb[0].mxu0
        %v1323 = vpop.f32.mrb[0].mxu0
        %1324 = vdwg.mxu0
        %1325 = vrot.lane.b32.xlu0 %v504, 88
        %v1326 = vpop.permute.xlu0 %1325
        %v1328 = vsel %vm510, %v1227, 0
        %v1331 = vsel %vm757, %v1326, 0
        %1333 = vmatprep.subr.bf16.mxu0 0
        %1334 = vmatpush1.bf16.msra.mxu0 %v1331
        %1335 = vmatprep.subr.bf16.mxu0 0
        %1336 = vmatpush1.bf16.msra.mxu0 0
        %1337 = vmatprep.subr.bf16.mxu0 0
        %1338 = vmatpush1.bf16.msra.mxu0 0
        %1339 = vmatprep.subr.bf16.mxu0 0
        %1340 = vmatpush1.bf16.msra.mxu0 0
        %1341 = vmatprep.subr.bf16.mxu0 0
        %1342 = vmatpush1.bf16.msra.mxu0 0
        %1343 = vmatprep.subr.bf16.mxu0 0
        %1344 = vmatpush1.bf16.msra.mxu0 0
        %1345 = vmatprep.subr.bf16.mxu0 0
        %1346 = vmatpush1.bf16.msra.mxu0 0
        %1347 = vmatprep.subr.bf16.mxu0 0
        %1348 = vmatpush1.bf16.msra.mxu0 0
        %1349 = vmatprep.subr.bf16.mxu0 0
        %1350 = vmatpush1.bf16.msra.mxu0 0
        %1351 = vmatprep.subr.bf16.mxu0 0
        %1352 = vmatpush1.bf16.msra.mxu0 0
        %1353 = vmatprep.subr.bf16.mxu0 0
        %1354 = vmatpush1.bf16.msra.mxu0 0
        %1355 = vmatprep.subr.bf16.mxu0 0
        %1356 = vmatpush1.bf16.msra.mxu0 0
        %1357 = vmatprep.subr.bf16.mxu0 0
        %1358 = vmatpush1.bf16.msra.mxu0 0
        %1359 = vmatprep.subr.bf16.mxu0 0
        %1360 = vmatpush1.bf16.msra.mxu0 0
        %1361 = vmatprep.subr.bf16.mxu0 0
        %1362 = vmatpush1.bf16.msra.mxu0 0
        %1363 = vmatprep.subr.bf16.mxu0 0
        %1364 = vmatpush1.bf16.msra.mxu0 0
        %1365 = vmatprep.mubr.bf16.mxu0 0
        %1366 = vmatmul.mubr.bf16.gmra.mrb[0].mxu0 %v1328
        %v1367 = vpop.f32.mrb[0].mxu0
        %v1368 = vadd.f32 0.0, %v1367
        %v1369 = vpop.f32.mrb[0].mxu0
        %v1370 = vpop.f32.mrb[0].mxu0
        %v1371 = vpop.f32.mrb[0].mxu0
        %1372 = vdwg.mxu0
        %1373 = vrot.lane.b32.xlu0 %v505, 88
        %v1374 = vpop.permute.xlu0 %1373
        %v1376 = vsel %vm510, %v1228, 0
        %v1379 = vsel %vm757, %v1374, 0
        %1381 = vmatprep.subr.bf16.mxu0 0
        %1382 = vmatpush1.bf16.msra.mxu0 %v1379
        %1383 = vmatprep.subr.bf16.mxu0 0
        %1384 = vmatpush1.bf16.msra.mxu0 0
        %1385 = vmatprep.subr.bf16.mxu0 0
        %1386 = vmatpush1.bf16.msra.mxu0 0
        %1387 = vmatprep.subr.bf16.mxu0 0
        %1388 = vmatpush1.bf16.msra.mxu0 0
        %1389 = vmatprep.subr.bf16.mxu0 0
        %1390 = vmatpush1.bf16.msra.mxu0 0
        %1391 = vmatprep.subr.bf16.mxu0 0
        %1392 = vmatpush1.bf16.msra.mxu0 0
        %1393 = vmatprep.subr.bf16.mxu0 0
        %1394 = vmatpush1.bf16.msra.mxu0 0
        %1395 = vmatprep.subr.bf16.mxu0 0
        %1396 = vmatpush1.bf16.msra.mxu0 0
        %1397 = vmatprep.subr.bf16.mxu0 0
        %1398 = vmatpush1.bf16.msra.mxu0 0
        %1399 = vmatprep.subr.bf16.mxu0 0
        %1400 = vmatpush1.bf16.msra.mxu0 0
        %1401 = vmatprep.subr.bf16.mxu0 0
        %1402 = vmatpush1.bf16.msra.mxu0 0
        %1403 = vmatprep.subr.bf16.mxu0 0
        %1404 = vmatpush1.bf16.msra.mxu0 0
        %1405 = vmatprep.subr.bf16.mxu0 0
        %1406 = vmatpush1.bf16.msra.mxu0 0
        %1407 = vmatprep.subr.bf16.mxu0 0
        %1408 = vmatpush1.bf16.msra.mxu0 0
        %1409 = vmatprep.subr.bf16.mxu0 0
        %1410 = vmatpush1.bf16.msra.mxu0 0
        %1411 = vmatprep.subr.bf16.mxu0 0
        %1412 = vmatpush1.bf16.msra.mxu0 0
        %1413 = vmatprep.mubr.bf16.mxu0 0
        %1414 = vmatmul.mubr.bf16.gmra.mrb[0].mxu0 %v1376
        %v1415 = vpop.f32.mrb[0].mxu0
        %v1416 = vadd.f32 0.0, %v1415
        %v1417 = vpop.f32.mrb[0].mxu0
        %v1418 = vpop.f32.mrb[0].mxu0
        %v1419 = vpop.f32.mrb[0].mxu0
        %1420 = vdwg.mxu0
        %1425 = vrot.lane.b32.xlu0 %v1272, 8
        %v1426 = vpop.permute.xlu0 %1425
        %1427 = vrot.lane.b32.xlu0 %v1320, 8
        %v1428 = vpop.permute.xlu0 %1427
        %1429 = vrot.lane.b32.xlu0 %v1368, 8
        %v1430 = vpop.permute.xlu0 %1429
        %1431 = vrot.lane.b32.xlu0 %v1416, 8
        %v1432 = vpop.permute.xlu0 %1431
        %1437 = vst.msk [vmem:[#allocation2] sm:$0xff] %vm1220, %v1426
        %1438 = vst.msk [vmem:[#allocation2 + $0x8] sm:$0xff] %vm1220, %v1428
        %1439 = vst.msk [vmem:[#allocation2 + $0x10] sm:$0xff] %vm1220, %v1430
        %1440 = vst.msk [vmem:[#allocation2 + $0x18] sm:$0xff] %vm1220, %v1432
        %1441 = vrot.lane.b32.xlu0 %v502, 112
        %v1442 = vpop.permute.xlu0 %1441
        %1443 = vrot.lane.b32.xlu0 %v506, 112
        %v1444 = vpop.permute.xlu0 %1443
        %v1446 = vsel %vm510, %v1442, 0
        %v1449 = vsel %vm510, %v1444, 0
        %1451 = vmatprep.subr.bf16.mxu0 0
        %1452 = vmatpush1.bf16.xpose.msra.mxu0 %v1449
        %1453 = vmatprep.subr.bf16.mxu0 0
        %1454 = vmatpush1.bf16.xpose.msra.mxu0 0
        %1455 = vmatprep.subr.bf16.mxu0 0
        %1456 = vmatpush1.bf16.xpose.msra.mxu0 0
        %1457 = vmatprep.subr.bf16.mxu0 0
        %1458 = vmatpush1.bf16.xpose.msra.mxu0 0
        %1459 = vmatprep.subr.bf16.mxu0 0
        %1460 = vmatpush1.bf16.xpose.msra.mxu0 0
        %1461 = vmatprep.subr.bf16.mxu0 0
        %1462 = vmatpush1.bf16.xpose.msra.mxu0 0
        %1463 = vmatprep.subr.bf16.mxu0 0
        %1464 = vmatpush1.bf16.xpose.msra.mxu0 0
        %1465 = vmatprep.subr.bf16.mxu0 0
        %1466 = vmatpush1.bf16.xpose.msra.mxu0 0
        %1467 = vmatprep.subr.bf16.mxu0 0
        %1468 = vmatpush1.bf16.xpose.msra.mxu0 0
        %1469 = vmatprep.subr.bf16.mxu0 0
        %1470 = vmatpush1.bf16.xpose.msra.mxu0 0
        %1471 = vmatprep.subr.bf16.mxu0 0
        %1472 = vmatpush1.bf16.xpose.msra.mxu0 0
        %1473 = vmatprep.subr.bf16.mxu0 0
        %1474 = vmatpush1.bf16.xpose.msra.mxu0 0
        %1475 = vmatprep.subr.bf16.mxu0 0
        %1476 = vmatpush1.bf16.xpose.msra.mxu0 0
        %1477 = vmatprep.subr.bf16.mxu0 0
        %1478 = vmatpush1.bf16.xpose.msra.mxu0 0
        %1479 = vmatprep.subr.bf16.mxu0 0
        %1480 = vmatpush1.bf16.xpose.msra.mxu0 0
        %1481 = vmatprep.subr.bf16.mxu0 0
        %1482 = vmatpush1.bf16.xpose.msra.mxu0 0
        %1483 = vmatprep.mubr.bf16.mxu0 0
        %1484 = vmatmul.mubr.bf16.gmra.mrb[0].mxu0 %v1446
        %v1485 = vpop.f32.mrb[0].mxu0
        %v1486 = vadd.f32 0.0, %v1485
        %v1487 = vpop.f32.mrb[0].mxu0
        %v1488 = vpop.f32.mrb[0].mxu0
        %v1489 = vpop.f32.mrb[0].mxu0
        %1490 = vdwg.mxu0
        %1491 = vrot.lane.b32.xlu0 %v503, 112
        %v1492 = vpop.permute.xlu0 %1491
        %1493 = vrot.lane.b32.xlu0 %v507, 112
        %v1494 = vpop.permute.xlu0 %1493
        %v1496 = vsel %vm510, %v1492, 0
        %v1499 = vsel %vm510, %v1494, 0
        %1501 = vmatprep.subr.bf16.mxu0 0
        %1502 = vmatpush1.bf16.xpose.msra.mxu0 %v1499
        %1503 = vmatprep.subr.bf16.mxu0 0
        %1504 = vmatpush1.bf16.xpose.msra.mxu0 0
        %1505 = vmatprep.subr.bf16.mxu0 0
        %1506 = vmatpush1.bf16.xpose.msra.mxu0 0
        %1507 = vmatprep.subr.bf16.mxu0 0
        %1508 = vmatpush1.bf16.xpose.msra.mxu0 0
        %1509 = vmatprep.subr.bf16.mxu0 0
        %1510 = vmatpush1.bf16.xpose.msra.mxu0 0
        %1511 = vmatprep.subr.bf16.mxu0 0
        %1512 = vmatpush1.bf16.xpose.msra.mxu0 0
        %1513 = vmatprep.subr.bf16.mxu0 0
        %1514 = vmatpush1.bf16.xpose.msra.mxu0 0
        %1515 = vmatprep.subr.bf16.mxu0 0
        %1516 = vmatpush1.bf16.xpose.msra.mxu0 0
        %1517 = vmatprep.subr.bf16.mxu0 0
        %1518 = vmatpush1.bf16.xpose.msra.mxu0 0
        %1519 = vmatprep.subr.bf16.mxu0 0
        %1520 = vmatpush1.bf16.xpose.msra.mxu0 0
        %1521 = vmatprep.subr.bf16.mxu0 0
        %1522 = vmatpush1.bf16.xpose.msra.mxu0 0
        %1523 = vmatprep.subr.bf16.mxu0 0
        %1524 = vmatpush1.bf16.xpose.msra.mxu0 0
        %1525 = vmatprep.subr.bf16.mxu0 0
        %1526 = vmatpush1.bf16.xpose.msra.mxu0 0
        %1527 = vmatprep.subr.bf16.mxu0 0
        %1528 = vmatpush1.bf16.xpose.msra.mxu0 0
        %1529 = vmatprep.subr.bf16.mxu0 0
        %1530 = vmatpush1.bf16.xpose.msra.mxu0 0
        %1531 = vmatprep.subr.bf16.mxu0 0
        %1532 = vmatpush1.bf16.xpose.msra.mxu0 0
        %1533 = vmatprep.mubr.bf16.mxu0 0
        %1534 = vmatmul.mubr.bf16.gmra.mrb[0].mxu0 %v1496
        %v1535 = vpop.f32.mrb[0].mxu0
        %v1536 = vadd.f32 0.0, %v1535
        %v1537 = vpop.f32.mrb[0].mxu0
        %v1538 = vpop.f32.mrb[0].mxu0
        %v1539 = vpop.f32.mrb[0].mxu0
        %1540 = vdwg.mxu0
        %1541 = vrot.lane.b32.xlu0 %v504, 112
        %v1542 = vpop.permute.xlu0 %1541
        %1543 = vrot.lane.b32.xlu0 %v508, 112
        %v1544 = vpop.permute.xlu0 %1543
        %v1546 = vsel %vm510, %v1542, 0
        %v1549 = vsel %vm510, %v1544, 0
        %1551 = vmatprep.subr.bf16.mxu0 0
        %1552 = vmatpush1.bf16.xpose.msra.mxu0 %v1549
        %1553 = vmatprep.subr.bf16.mxu0 0
        %1554 = vmatpush1.bf16.xpose.msra.mxu0 0
        %1555 = vmatprep.subr.bf16.mxu0 0
        %1556 = vmatpush1.bf16.xpose.msra.mxu0 0
        %1557 = vmatprep.subr.bf16.mxu0 0
        %1558 = vmatpush1.bf16.xpose.msra.mxu0 0
        %1559 = vmatprep.subr.bf16.mxu0 0
        %1560 = vmatpush1.bf16.xpose.msra.mxu0 0
        %1561 = vmatprep.subr.bf16.mxu0 0
        %1562 = vmatpush1.bf16.xpose.msra.mxu0 0
        %1563 = vmatprep.subr.bf16.mxu0 0
        %1564 = vmatpush1.bf16.xpose.msra.mxu0 0
        %1565 = vmatprep.subr.bf16.mxu0 0
        %1566 = vmatpush1.bf16.xpose.msra.mxu0 0
        %1567 = vmatprep.subr.bf16.mxu0 0
        %1568 = vmatpush1.bf16.xpose.msra.mxu0 0
        %1569 = vmatprep.subr.bf16.mxu0 0
        %1570 = vmatpush1.bf16.xpose.msra.mxu0 0
        %1571 = vmatprep.subr.bf16.mxu0 0
        %1572 = vmatpush1.bf16.xpose.msra.mxu0 0
        %1573 = vmatprep.subr.bf16.mxu0 0
        %1574 = vmatpush1.bf16.xpose.msra.mxu0 0
        %1575 = vmatprep.subr.bf16.mxu0 0
        %1576 = vmatpush1.bf16.xpose.msra.mxu0 0
        %1577 = vmatprep.subr.bf16.mxu0 0
        %1578 = vmatpush1.bf16.xpose.msra.mxu0 0
        %1579 = vmatprep.subr.bf16.mxu0 0
        %1580 = vmatpush1.bf16.xpose.msra.mxu0 0
        %1581 = vmatprep.subr.bf16.mxu0 0
        %1582 = vmatpush1.bf16.xpose.msra.mxu0 0
        %1583 = vmatprep.mubr.bf16.mxu0 0
        %1584 = vmatmul.mubr.bf16.gmra.mrb[0].mxu0 %v1546
        %v1585 = vpop.f32.mrb[0].mxu0
        %v1586 = vadd.f32 0.0, %v1585
        %v1587 = vpop.f32.mrb[0].mxu0
        %v1588 = vpop.f32.mrb[0].mxu0
        %v1589 = vpop.f32.mrb[0].mxu0
        %1590 = vdwg.mxu0
        %1591 = vrot.lane.b32.xlu0 %v505, 112
        %v1592 = vpop.permute.xlu0 %1591
        %1593 = vrot.lane.b32.xlu0 %v509, 112
        %v1594 = vpop.permute.xlu0 %1593
        %v1596 = vsel %vm510, %v1592, 0
        %v1599 = vsel %vm510, %v1594, 0
        %1601 = vmatprep.subr.bf16.mxu0 0
        %1602 = vmatpush1.bf16.xpose.msra.mxu0 %v1599
        %1603 = vmatprep.subr.bf16.mxu0 0
        %1604 = vmatpush1.bf16.xpose.msra.mxu0 0
        %1605 = vmatprep.subr.bf16.mxu0 0
        %1606 = vmatpush1.bf16.xpose.msra.mxu0 0
        %1607 = vmatprep.subr.bf16.mxu0 0
        %1608 = vmatpush1.bf16.xpose.msra.mxu0 0
        %1609 = vmatprep.subr.bf16.mxu0 0
        %1610 = vmatpush1.bf16.xpose.msra.mxu0 0
        %1611 = vmatprep.subr.bf16.mxu0 0
        %1612 = vmatpush1.bf16.xpose.msra.mxu0 0
        %1613 = vmatprep.subr.bf16.mxu0 0
        %1614 = vmatpush1.bf16.xpose.msra.mxu0 0
        %1615 = vmatprep.subr.bf16.mxu0 0
        %1616 = vmatpush1.bf16.xpose.msra.mxu0 0
        %1617 = vmatprep.subr.bf16.mxu0 0
        %1618 = vmatpush1.bf16.xpose.msra.mxu0 0
        %1619 = vmatprep.subr.bf16.mxu0 0
        %1620 = vmatpush1.bf16.xpose.msra.mxu0 0
        %1621 = vmatprep.subr.bf16.mxu0 0
        %1622 = vmatpush1.bf16.xpose.msra.mxu0 0
        %1623 = vmatprep.subr.bf16.mxu0 0
        %1624 = vmatpush1.bf16.xpose.msra.mxu0 0
        %1625 = vmatprep.subr.bf16.mxu0 0
        %1626 = vmatpush1.bf16.xpose.msra.mxu0 0
        %1627 = vmatprep.subr.bf16.mxu0 0
        %1628 = vmatpush1.bf16.xpose.msra.mxu0 0
        %1629 = vmatprep.subr.bf16.mxu0 0
        %1630 = vmatpush1.bf16.xpose.msra.mxu0 0
        %1631 = vmatprep.subr.bf16.mxu0 0
        %1632 = vmatpush1.bf16.xpose.msra.mxu0 0
        %1633 = vmatprep.mubr.bf16.mxu0 0
        %1634 = vmatmul.mubr.bf16.gmra.mrb[0].mxu0 %v1596
        %v1635 = vpop.f32.mrb[0].mxu0
        %v1636 = vadd.f32 0.0, %v1635
        %v1637 = vpop.f32.mrb[0].mxu0
        %v1638 = vpop.f32.mrb[0].mxu0
        %v1639 = vpop.f32.mrb[0].mxu0
        %1640 = vdwg.mxu0
        %v1641 = vmul.f32 %v1486, 0.35355338
        %v1642 = vmul.f32 %v1536, 0.35355338
        %v1643 = vmul.f32 %v1586, 0.35355338
        %v1644 = vmul.f32 %v1636, 0.35355338
        %v1645 = vsel %vm510, %v1641, -inf
        %1646 = vmax.xlane.f32.xlu0 %v1645
        %v1647 = vpop.xlane.xlu0 %1646
        %v1648 = vsel %vm510, %v1642, -inf
        %1649 = vmax.xlane.f32.xlu0 %v1648
        %v1650 = vpop.xlane.xlu0 %1649
        %v1651 = vsel %vm510, %v1643, -inf
        %1652 = vmax.xlane.f32.xlu0 %v1651
        %v1653 = vpop.xlane.xlu0 %1652
        %v1654 = vsel %vm510, %v1644, -inf
        %1655 = vmax.xlane.f32.xlu0 %v1654
        %v1656 = vpop.xlane.xlu0 %1655
        %v1657 = vsub.f32 %v1641, %v1647
        %v1658 = vsub.f32 %v1642, %v1650
        %v1659 = vsub.f32 %v1643, %v1653
        %v1660 = vsub.f32 %v1644, %v1656
        %v1661 = vmul.f32 %v1657, 1.442695
        %v1662 = vpow.pop %v1661
        %v1663 = vmul.f32 %v1658, 1.442695
        %v1664 = vpow.pop %v1663
        %v1665 = vmul.f32 %v1659, 1.442695
        %v1666 = vpow.pop %v1665
        %v1667 = vmul.f32 %v1660, 1.442695
        %v1668 = vpow.pop %v1667
        %v1669 = vsel %vm510, %v1662, 0.0
        %1670 = vadd.xlane.f32.xlu0 %v1669
        %v1671 = vpop.xlane.xlu0 %1670
        %v1672 = vsel %vm510, %v1664, 0.0
        %1673 = vadd.xlane.f32.xlu0 %v1672
        %v1674 = vpop.xlane.xlu0 %1673
        %v1675 = vsel %vm510, %v1666, 0.0
        %1676 = vadd.xlane.f32.xlu0 %v1675
        %v1677 = vpop.xlane.xlu0 %1676
        %v1678 = vsel %vm510, %v1668, 0.0
        %1679 = vadd.xlane.f32.xlu0 %v1678
        %v1680 = vpop.xlane.xlu0 %1679
        %v1681 = vrcp.pop %v1671
        %v1682 = vrcp.pop %v1674
        %v1683 = vrcp.pop %v1677
        %v1684 = vrcp.pop %v1680
        %v1685 = vmul.f32 %v1662, %v1681
        %v1686 = vmul.f32 %v1664, %v1682
        %v1687 = vmul.f32 %v1666, %v1683
        %v1688 = vmul.f32 %v1668, %v1684
        %1693 = vrot.lane.b32.xlu0 %v1685, 16
        %v1694 = vpop.permute.xlu0 %1693
        %1695 = vrot.lane.b32.xlu0 %v1686, 16
        %v1696 = vpop.permute.xlu0 %1695
        %1697 = vrot.lane.b32.xlu0 %v1687, 16
        %v1698 = vpop.permute.xlu0 %1697
        %1699 = vrot.lane.b32.xlu0 %v1688, 16
        %v1700 = vpop.permute.xlu0 %1699
        %vm1705 = vcmask 195712
        %1706 = vst.msk [vmem:[%s326] sm:$0xff] %vm1705, %v1694
        %1707 = vst.msk [vmem:[%s326 + $0x8] sm:$0xff] %vm1705, %v1696
        %1708 = vst.msk [vmem:[%s326 + $0x10] sm:$0xff] %vm1705, %v1698
        %1709 = vst.msk [vmem:[%s326 + $0x18] sm:$0xff] %vm1705, %v1700
        %v1710 = vpack.c.bf16 %v1685, %v1685
        %v1711 = vpack.c.bf16 %v1686, %v1686
        %v1712 = vpack.c.bf16 %v1687, %v1687
        %v1713 = vpack.c.bf16 %v1688, %v1688
        %1714 = vrot.lane.b32.xlu0 %v502, 80
        %v1715 = vpop.permute.xlu0 %1714
        %v1717 = vsel %vm510, %v1710, 0
        %v1720 = vsel %vm757, %v1715, 0
        %1722 = vmatprep.subr.bf16.mxu0 0
        %1723 = vmatpush1.bf16.msra.mxu0 %v1720
        %1724 = vmatprep.subr.bf16.mxu0 0
        %1725 = vmatpush1.bf16.msra.mxu0 0
        %1726 = vmatprep.subr.bf16.mxu0 0
        %1727 = vmatpush1.bf16.msra.mxu0 0
        %1728 = vmatprep.subr.bf16.mxu0 0
        %1729 = vmatpush1.bf16.msra.mxu0 0
        %1730 = vmatprep.subr.bf16.mxu0 0
        %1731 = vmatpush1.bf16.msra.mxu0 0
        %1732 = vmatprep.subr.bf16.mxu0 0
        %1733 = vmatpush1.bf16.msra.mxu0 0
        %1734 = vmatprep.subr.bf16.mxu0 0
        %1735 = vmatpush1.bf16.msra.mxu0 0
        %1736 = vmatprep.subr.bf16.mxu0 0
        %1737 = vmatpush1.bf16.msra.mxu0 0
        %1738 = vmatprep.subr.bf16.mxu0 0
        %1739 = vmatpush1.bf16.msra.mxu0 0
        %1740 = vmatprep.subr.bf16.mxu0 0
        %1741 = vmatpush1.bf16.msra.mxu0 0
        %1742 = vmatprep.subr.bf16.mxu0 0
        %1743 = vmatpush1.bf16.msra.mxu0 0
        %1744 = vmatprep.subr.bf16.mxu0 0
        %1745 = vmatpush1.bf16.msra.mxu0 0
        %1746 = vmatprep.subr.bf16.mxu0 0
        %1747 = vmatpush1.bf16.msra.mxu0 0
        %1748 = vmatprep.subr.bf16.mxu0 0
        %1749 = vmatpush1.bf16.msra.mxu0 0
        %1750 = vmatprep.subr.bf16.mxu0 0
        %1751 = vmatpush1.bf16.msra.mxu0 0
        %1752 = vmatprep.subr.bf16.mxu0 0
        %1753 = vmatpush1.bf16.msra.mxu0 0
        %1754 = vmatprep.mubr.bf16.mxu0 0
        %1755 = vmatmul.mubr.bf16.gmra.mrb[0].mxu0 %v1717
        %v1756 = vpop.f32.mrb[0].mxu0
        %v1757 = vadd.f32 0.0, %v1756
        %v1758 = vpop.f32.mrb[0].mxu0
        %v1759 = vpop.f32.mrb[0].mxu0
        %v1760 = vpop.f32.mrb[0].mxu0
        %1761 = vdwg.mxu0
        %1762 = vrot.lane.b32.xlu0 %v503, 80
        %v1763 = vpop.permute.xlu0 %1762
        %v1765 = vsel %vm510, %v1711, 0
        %v1768 = vsel %vm757, %v1763, 0
        %1770 = vmatprep.subr.bf16.mxu0 0
        %1771 = vmatpush1.bf16.msra.mxu0 %v1768
        %1772 = vmatprep.subr.bf16.mxu0 0
        %1773 = vmatpush1.bf16.msra.mxu0 0
        %1774 = vmatprep.subr.bf16.mxu0 0
        %1775 = vmatpush1.bf16.msra.mxu0 0
        %1776 = vmatprep.subr.bf16.mxu0 0
        %1777 = vmatpush1.bf16.msra.mxu0 0
        %1778 = vmatprep.subr.bf16.mxu0 0
        %1779 = vmatpush1.bf16.msra.mxu0 0
        %1780 = vmatprep.subr.bf16.mxu0 0
        %1781 = vmatpush1.bf16.msra.mxu0 0
        %1782 = vmatprep.subr.bf16.mxu0 0
        %1783 = vmatpush1.bf16.msra.mxu0 0
        %1784 = vmatprep.subr.bf16.mxu0 0
        %1785 = vmatpush1.bf16.msra.mxu0 0
        %1786 = vmatprep.subr.bf16.mxu0 0
        %1787 = vmatpush1.bf16.msra.mxu0 0
        %1788 = vmatprep.subr.bf16.mxu0 0
        %1789 = vmatpush1.bf16.msra.mxu0 0
        %1790 = vmatprep.subr.bf16.mxu0 0
        %1791 = vmatpush1.bf16.msra.mxu0 0
        %1792 = vmatprep.subr.bf16.mxu0 0
        %1793 = vmatpush1.bf16.msra.mxu0 0
        %1794 = vmatprep.subr.bf16.mxu0 0
        %1795 = vmatpush1.bf16.msra.mxu0 0
        %1796 = vmatprep.subr.bf16.mxu0 0
        %1797 = vmatpush1.bf16.msra.mxu0 0
        %1798 = vmatprep.subr.bf16.mxu0 0
        %1799 = vmatpush1.bf16.msra.mxu0 0
        %1800 = vmatprep.subr.bf16.mxu0 0
        %1801 = vmatpush1.bf16.msra.mxu0 0
        %1802 = vmatprep.mubr.bf16.mxu0 0
        %1803 = vmatmul.mubr.bf16.gmra.mrb[0].mxu0 %v1765
        %v1804 = vpop.f32.mrb[0].mxu0
        %v1805 = vadd.f32 0.0, %v1804
        %v1806 = vpop.f32.mrb[0].mxu0
        %v1807 = vpop.f32.mrb[0].mxu0
        %v1808 = vpop.f32.mrb[0].mxu0
        %1809 = vdwg.mxu0
        %1810 = vrot.lane.b32.xlu0 %v504, 80
        %v1811 = vpop.permute.xlu0 %1810
        %v1813 = vsel %vm510, %v1712, 0
        %v1816 = vsel %vm757, %v1811, 0
        %1818 = vmatprep.subr.bf16.mxu0 0
        %1819 = vmatpush1.bf16.msra.mxu0 %v1816
        %1820 = vmatprep.subr.bf16.mxu0 0
        %1821 = vmatpush1.bf16.msra.mxu0 0
        %1822 = vmatprep.subr.bf16.mxu0 0
        %1823 = vmatpush1.bf16.msra.mxu0 0
        %1824 = vmatprep.subr.bf16.mxu0 0
        %1825 = vmatpush1.bf16.msra.mxu0 0
        %1826 = vmatprep.subr.bf16.mxu0 0
        %1827 = vmatpush1.bf16.msra.mxu0 0
        %1828 = vmatprep.subr.bf16.mxu0 0
        %1829 = vmatpush1.bf16.msra.mxu0 0
        %1830 = vmatprep.subr.bf16.mxu0 0
        %1831 = vmatpush1.bf16.msra.mxu0 0
        %1832 = vmatprep.subr.bf16.mxu0 0
        %1833 = vmatpush1.bf16.msra.mxu0 0
        %1834 = vmatprep.subr.bf16.mxu0 0
        %1835 = vmatpush1.bf16.msra.mxu0 0
        %1836 = vmatprep.subr.bf16.mxu0 0
        %1837 = vmatpush1.bf16.msra.mxu0 0
        %1838 = vmatprep.subr.bf16.mxu0 0
        %1839 = vmatpush1.bf16.msra.mxu0 0
        %1840 = vmatprep.subr.bf16.mxu0 0
        %1841 = vmatpush1.bf16.msra.mxu0 0
        %1842 = vmatprep.subr.bf16.mxu0 0
        %1843 = vmatpush1.bf16.msra.mxu0 0
        %1844 = vmatprep.subr.bf16.mxu0 0
        %1845 = vmatpush1.bf16.msra.mxu0 0
        %1846 = vmatprep.subr.bf16.mxu0 0
        %1847 = vmatpush1.bf16.msra.mxu0 0
        %1848 = vmatprep.subr.bf16.mxu0 0
        %1849 = vmatpush1.bf16.msra.mxu0 0
        %1850 = vmatprep.mubr.bf16.mxu0 0
        %1851 = vmatmul.mubr.bf16.gmra.mrb[0].mxu0 %v1813
        %v1852 = vpop.f32.mrb[0].mxu0
        %v1853 = vadd.f32 0.0, %v1852
        %v1854 = vpop.f32.mrb[0].mxu0
        %v1855 = vpop.f32.mrb[0].mxu0
        %v1856 = vpop.f32.mrb[0].mxu0
        %1857 = vdwg.mxu0
        %1858 = vrot.lane.b32.xlu0 %v505, 80
        %v1859 = vpop.permute.xlu0 %1858
        %v1861 = vsel %vm510, %v1713, 0
        %v1864 = vsel %vm757, %v1859, 0
        %1866 = vmatprep.subr.bf16.mxu0 0
        %1867 = vmatpush1.bf16.msra.mxu0 %v1864
        %1868 = vmatprep.subr.bf16.mxu0 0
        %1869 = vmatpush1.bf16.msra.mxu0 0
        %1870 = vmatprep.subr.bf16.mxu0 0
        %1871 = vmatpush1.bf16.msra.mxu0 0
        %1872 = vmatprep.subr.bf16.mxu0 0
        %1873 = vmatpush1.bf16.msra.mxu0 0
        %1874 = vmatprep.subr.bf16.mxu0 0
        %1875 = vmatpush1.bf16.msra.mxu0 0
        %1876 = vmatprep.subr.bf16.mxu0 0
        %1877 = vmatpush1.bf16.msra.mxu0 0
        %1878 = vmatprep.subr.bf16.mxu0 0
        %1879 = vmatpush1.bf16.msra.mxu0 0
        %1880 = vmatprep.subr.bf16.mxu0 0
        %1881 = vmatpush1.bf16.msra.mxu0 0
        %1882 = vmatprep.subr.bf16.mxu0 0
        %1883 = vmatpush1.bf16.msra.mxu0 0
        %1884 = vmatprep.subr.bf16.mxu0 0
        %1885 = vmatpush1.bf16.msra.mxu0 0
        %1886 = vmatprep.subr.bf16.mxu0 0
        %1887 = vmatpush1.bf16.msra.mxu0 0
        %1888 = vmatprep.subr.bf16.mxu0 0
        %1889 = vmatpush1.bf16.msra.mxu0 0
        %1890 = vmatprep.subr.bf16.mxu0 0
        %1891 = vmatpush1.bf16.msra.mxu0 0
        %1892 = vmatprep.subr.bf16.mxu0 0
        %1893 = vmatpush1.bf16.msra.mxu0 0
        %1894 = vmatprep.subr.bf16.mxu0 0
        %1895 = vmatpush1.bf16.msra.mxu0 0
        %1896 = vmatprep.subr.bf16.mxu0 0
        %1897 = vmatpush1.bf16.msra.mxu0 0
        %1898 = vmatprep.mubr.bf16.mxu0 0
        %1899 = vmatmul.mubr.bf16.gmra.mrb[0].mxu0 %v1861
        %v1900 = vpop.f32.mrb[0].mxu0
        %v1901 = vadd.f32 0.0, %v1900
        %v1902 = vpop.f32.mrb[0].mxu0
        %v1903 = vpop.f32.mrb[0].mxu0
        %v1904 = vpop.f32.mrb[0].mxu0
        %1905 = vdwg.mxu0
        %1910 = vrot.lane.b32.xlu0 %v1757, 16
        %v1911 = vpop.permute.xlu0 %1910
        %1912 = vrot.lane.b32.xlu0 %v1805, 16
        %v1913 = vpop.permute.xlu0 %1912
        %1914 = vrot.lane.b32.xlu0 %v1853, 16
        %v1915 = vpop.permute.xlu0 %1914
        %1916 = vrot.lane.b32.xlu0 %v1901, 16
        %v1917 = vpop.permute.xlu0 %1916
        %1922 = vst.msk [vmem:[#allocation2] sm:$0xff] %vm1705, %v1911
        %1923 = vst.msk [vmem:[#allocation2 + $0x8] sm:$0xff] %vm1705, %v1913
        %1924 = vst.msk [vmem:[#allocation2 + $0x10] sm:$0xff] %vm1705, %v1915
        %1925 = vst.msk [vmem:[#allocation2 + $0x18] sm:$0xff] %vm1705, %v1917
        %1926 = vrot.lane.b32.xlu0 %v502, 104
        %v1927 = vpop.permute.xlu0 %1926
        %1928 = vrot.lane.b32.xlu0 %v506, 104
        %v1929 = vpop.permute.xlu0 %1928
        %v1931 = vsel %vm510, %v1927, 0
        %v1934 = vsel %vm510, %v1929, 0
        %1936 = vmatprep.subr.bf16.mxu0 0
        %1937 = vmatpush1.bf16.xpose.msra.mxu0 %v1934
        %1938 = vmatprep.subr.bf16.mxu0 0
        %1939 = vmatpush1.bf16.xpose.msra.mxu0 0
        %1940 = vmatprep.subr.bf16.mxu0 0
        %1941 = vmatpush1.bf16.xpose.msra.mxu0 0
        %1942 = vmatprep.subr.bf16.mxu0 0
        %1943 = vmatpush1.bf16.xpose.msra.mxu0 0
        %1944 = vmatprep.subr.bf16.mxu0 0
        %1945 = vmatpush1.bf16.xpose.msra.mxu0 0
        %1946 = vmatprep.subr.bf16.mxu0 0
        %1947 = vmatpush1.bf16.xpose.msra.mxu0 0
        %1948 = vmatprep.subr.bf16.mxu0 0
        %1949 = vmatpush1.bf16.xpose.msra.mxu0 0
        %1950 = vmatprep.subr.bf16.mxu0 0
        %1951 = vmatpush1.bf16.xpose.msra.mxu0 0
        %1952 = vmatprep.subr.bf16.mxu0 0
        %1953 = vmatpush1.bf16.xpose.msra.mxu0 0
        %1954 = vmatprep.subr.bf16.mxu0 0
        %1955 = vmatpush1.bf16.xpose.msra.mxu0 0
        %1956 = vmatprep.subr.bf16.mxu0 0
        %1957 = vmatpush1.bf16.xpose.msra.mxu0 0
        %1958 = vmatprep.subr.bf16.mxu0 0
        %1959 = vmatpush1.bf16.xpose.msra.mxu0 0
        %1960 = vmatprep.subr.bf16.mxu0 0
        %1961 = vmatpush1.bf16.xpose.msra.mxu0 0
        %1962 = vmatprep.subr.bf16.mxu0 0
        %1963 = vmatpush1.bf16.xpose.msra.mxu0 0
        %1964 = vmatprep.subr.bf16.mxu0 0
        %1965 = vmatpush1.bf16.xpose.msra.mxu0 0
        %1966 = vmatprep.subr.bf16.mxu0 0
        %1967 = vmatpush1.bf16.xpose.msra.mxu0 0
        %1968 = vmatprep.mubr.bf16.mxu0 0
        %1969 = vmatmul.mubr.bf16.gmra.mrb[0].mxu0 %v1931
        %v1970 = vpop.f32.mrb[0].mxu0
        %v1971 = vadd.f32 0.0, %v1970
        %v1972 = vpop.f32.mrb[0].mxu0
        %v1973 = vpop.f32.mrb[0].mxu0
        %v1974 = vpop.f32.mrb[0].mxu0
        %1975 = vdwg.mxu0
        %1976 = vrot.lane.b32.xlu0 %v503, 104
        %v1977 = vpop.permute.xlu0 %1976
        %1978 = vrot.lane.b32.xlu0 %v507, 104
        %v1979 = vpop.permute.xlu0 %1978
        %v1981 = vsel %vm510, %v1977, 0
        %v1984 = vsel %vm510, %v1979, 0
        %1986 = vmatprep.subr.bf16.mxu0 0
        %1987 = vmatpush1.bf16.xpose.msra.mxu0 %v1984
        %1988 = vmatprep.subr.bf16.mxu0 0
        %1989 = vmatpush1.bf16.xpose.msra.mxu0 0
        %1990 = vmatprep.subr.bf16.mxu0 0
        %1991 = vmatpush1.bf16.xpose.msra.mxu0 0
        %1992 = vmatprep.subr.bf16.mxu0 0
        %1993 = vmatpush1.bf16.xpose.msra.mxu0 0
        %1994 = vmatprep.subr.bf16.mxu0 0
        %1995 = vmatpush1.bf16.xpose.msra.mxu0 0
        %1996 = vmatprep.subr.bf16.mxu0 0
        %1997 = vmatpush1.bf16.xpose.msra.mxu0 0
        %1998 = vmatprep.subr.bf16.mxu0 0
        %1999 = vmatpush1.bf16.xpose.msra.mxu0 0
        %2000 = vmatprep.subr.bf16.mxu0 0
        %2001 = vmatpush1.bf16.xpose.msra.mxu0 0
        %2002 = vmatprep.subr.bf16.mxu0 0
        %2003 = vmatpush1.bf16.xpose.msra.mxu0 0
        %2004 = vmatprep.subr.bf16.mxu0 0
        %2005 = vmatpush1.bf16.xpose.msra.mxu0 0
        %2006 = vmatprep.subr.bf16.mxu0 0
        %2007 = vmatpush1.bf16.xpose.msra.mxu0 0
        %2008 = vmatprep.subr.bf16.mxu0 0
        %2009 = vmatpush1.bf16.xpose.msra.mxu0 0
        %2010 = vmatprep.subr.bf16.mxu0 0
        %2011 = vmatpush1.bf16.xpose.msra.mxu0 0
        %2012 = vmatprep.subr.bf16.mxu0 0
        %2013 = vmatpush1.bf16.xpose.msra.mxu0 0
        %2014 = vmatprep.subr.bf16.mxu0 0
        %2015 = vmatpush1.bf16.xpose.msra.mxu0 0
        %2016 = vmatprep.subr.bf16.mxu0 0
        %2017 = vmatpush1.bf16.xpose.msra.mxu0 0
        %2018 = vmatprep.mubr.bf16.mxu0 0
        %2019 = vmatmul.mubr.bf16.gmra.mrb[0].mxu0 %v1981
        %v2020 = vpop.f32.mrb[0].mxu0
        %v2021 = vadd.f32 0.0, %v2020
        %v2022 = vpop.f32.mrb[0].mxu0
        %v2023 = vpop.f32.mrb[0].mxu0
        %v2024 = vpop.f32.mrb[0].mxu0
        %2025 = vdwg.mxu0
        %2026 = vrot.lane.b32.xlu0 %v504, 104
        %v2027 = vpop.permute.xlu0 %2026
        %2028 = vrot.lane.b32.xlu0 %v508, 104
        %v2029 = vpop.permute.xlu0 %2028
        %v2031 = vsel %vm510, %v2027, 0
        %v2034 = vsel %vm510, %v2029, 0
        %2036 = vmatprep.subr.bf16.mxu0 0
        %2037 = vmatpush1.bf16.xpose.msra.mxu0 %v2034
        %2038 = vmatprep.subr.bf16.mxu0 0
        %2039 = vmatpush1.bf16.xpose.msra.mxu0 0
        %2040 = vmatprep.subr.bf16.mxu0 0
        %2041 = vmatpush1.bf16.xpose.msra.mxu0 0
        %2042 = vmatprep.subr.bf16.mxu0 0
        %2043 = vmatpush1.bf16.xpose.msra.mxu0 0
        %2044 = vmatprep.subr.bf16.mxu0 0
        %2045 = vmatpush1.bf16.xpose.msra.mxu0 0
        %2046 = vmatprep.subr.bf16.mxu0 0
        %2047 = vmatpush1.bf16.xpose.msra.mxu0 0
        %2048 = vmatprep.subr.bf16.mxu0 0
        %2049 = vmatpush1.bf16.xpose.msra.mxu0 0
        %2050 = vmatprep.subr.bf16.mxu0 0
        %2051 = vmatpush1.bf16.xpose.msra.mxu0 0
        %2052 = vmatprep.subr.bf16.mxu0 0
        %2053 = vmatpush1.bf16.xpose.msra.mxu0 0
        %2054 = vmatprep.subr.bf16.mxu0 0
        %2055 = vmatpush1.bf16.xpose.msra.mxu0 0
        %2056 = vmatprep.subr.bf16.mxu0 0
        %2057 = vmatpush1.bf16.xpose.msra.mxu0 0
        %2058 = vmatprep.subr.bf16.mxu0 0
        %2059 = vmatpush1.bf16.xpose.msra.mxu0 0
        %2060 = vmatprep.subr.bf16.mxu0 0
        %2061 = vmatpush1.bf16.xpose.msra.mxu0 0
        %2062 = vmatprep.subr.bf16.mxu0 0
        %2063 = vmatpush1.bf16.xpose.msra.mxu0 0
        %2064 = vmatprep.subr.bf16.mxu0 0
        %2065 = vmatpush1.bf16.xpose.msra.mxu0 0
        %2066 = vmatprep.subr.bf16.mxu0 0
        %2067 = vmatpush1.bf16.xpose.msra.mxu0 0
        %2068 = vmatprep.mubr.bf16.mxu0 0
        %2069 = vmatmul.mubr.bf16.gmra.mrb[0].mxu0 %v2031
        %v2070 = vpop.f32.mrb[0].mxu0
        %v2071 = vadd.f32 0.0, %v2070
        %v2072 = vpop.f32.mrb[0].mxu0
        %v2073 = vpop.f32.mrb[0].mxu0
        %v2074 = vpop.f32.mrb[0].mxu0
        %2075 = vdwg.mxu0
        %2076 = vrot.lane.b32.xlu0 %v505, 104
        %v2077 = vpop.permute.xlu0 %2076
        %2078 = vrot.lane.b32.xlu0 %v509, 104
        %v2079 = vpop.permute.xlu0 %2078
        %v2081 = vsel %vm510, %v2077, 0
        %v2084 = vsel %vm510, %v2079, 0
        %2086 = vmatprep.subr.bf16.mxu0 0
        %2087 = vmatpush1.bf16.xpose.msra.mxu0 %v2084
        %2088 = vmatprep.subr.bf16.mxu0 0
        %2089 = vmatpush1.bf16.xpose.msra.mxu0 0
        %2090 = vmatprep.subr.bf16.mxu0 0
        %2091 = vmatpush1.bf16.xpose.msra.mxu0 0
        %2092 = vmatprep.subr.bf16.mxu0 0
        %2093 = vmatpush1.bf16.xpose.msra.mxu0 0
        %2094 = vmatprep.subr.bf16.mxu0 0
        %2095 = vmatpush1.bf16.xpose.msra.mxu0 0
        %2096 = vmatprep.subr.bf16.mxu0 0
        %2097 = vmatpush1.bf16.xpose.msra.mxu0 0
        %2098 = vmatprep.subr.bf16.mxu0 0
        %2099 = vmatpush1.bf16.xpose.msra.mxu0 0
        %2100 = vmatprep.subr.bf16.mxu0 0
        %2101 = vmatpush1.bf16.xpose.msra.mxu0 0
        %2102 = vmatprep.subr.bf16.mxu0 0
        %2103 = vmatpush1.bf16.xpose.msra.mxu0 0
        %2104 = vmatprep.subr.bf16.mxu0 0
        %2105 = vmatpush1.bf16.xpose.msra.mxu0 0
        %2106 = vmatprep.subr.bf16.mxu0 0
        %2107 = vmatpush1.bf16.xpose.msra.mxu0 0
        %2108 = vmatprep.subr.bf16.mxu0 0
        %2109 = vmatpush1.bf16.xpose.msra.mxu0 0
        %2110 = vmatprep.subr.bf16.mxu0 0
        %2111 = vmatpush1.bf16.xpose.msra.mxu0 0
        %2112 = vmatprep.subr.bf16.mxu0 0
        %2113 = vmatpush1.bf16.xpose.msra.mxu0 0
        %2114 = vmatprep.subr.bf16.mxu0 0
        %2115 = vmatpush1.bf16.xpose.msra.mxu0 0
        %2116 = vmatprep.subr.bf16.mxu0 0
        %2117 = vmatpush1.bf16.xpose.msra.mxu0 0
        %2118 = vmatprep.mubr.bf16.mxu0 0
        %2119 = vmatmul.mubr.bf16.gmra.mrb[0].mxu0 %v2081
        %v2120 = vpop.f32.mrb[0].mxu0
        %v2121 = vadd.f32 0.0, %v2120
        %v2122 = vpop.f32.mrb[0].mxu0
        %v2123 = vpop.f32.mrb[0].mxu0
        %v2124 = vpop.f32.mrb[0].mxu0
        %2125 = vdwg.mxu0
        %v2126 = vmul.f32 %v1971, 0.35355338
        %v2127 = vmul.f32 %v2021, 0.35355338
        %v2128 = vmul.f32 %v2071, 0.35355338
        %v2129 = vmul.f32 %v2121, 0.35355338
        %v2130 = vsel %vm510, %v2126, -inf
        %2131 = vmax.xlane.f32.xlu0 %v2130
        %v2132 = vpop.xlane.xlu0 %2131
        %v2133 = vsel %vm510, %v2127, -inf
        %2134 = vmax.xlane.f32.xlu0 %v2133
        %v2135 = vpop.xlane.xlu0 %2134
        %v2136 = vsel %vm510, %v2128, -inf
        %2137 = vmax.xlane.f32.xlu0 %v2136
        %v2138 = vpop.xlane.xlu0 %2137
        %v2139 = vsel %vm510, %v2129, -inf
        %2140 = vmax.xlane.f32.xlu0 %v2139
        %v2141 = vpop.xlane.xlu0 %2140
        %v2142 = vsub.f32 %v2126, %v2132
        %v2143 = vsub.f32 %v2127, %v2135
        %v2144 = vsub.f32 %v2128, %v2138
        %v2145 = vsub.f32 %v2129, %v2141
        %v2146 = vmul.f32 %v2142, 1.442695
        %v2147 = vpow.pop %v2146
        %v2148 = vmul.f32 %v2143, 1.442695
        %v2149 = vpow.pop %v2148
        %v2150 = vmul.f32 %v2144, 1.442695
        %v2151 = vpow.pop %v2150
        %v2152 = vmul.f32 %v2145, 1.442695
        %v2153 = vpow.pop %v2152
        %v2154 = vsel %vm510, %v2147, 0.0
        %2155 = vadd.xlane.f32.xlu0 %v2154
        %v2156 = vpop.xlane.xlu0 %2155
        %v2157 = vsel %vm510, %v2149, 0.0
        %2158 = vadd.xlane.f32.xlu0 %v2157
        %v2159 = vpop.xlane.xlu0 %2158
        %v2160 = vsel %vm510, %v2151, 0.0
        %2161 = vadd.xlane.f32.xlu0 %v2160
        %v2162 = vpop.xlane.xlu0 %2161
        %v2163 = vsel %vm510, %v2153, 0.0
        %2164 = vadd.xlane.f32.xlu0 %v2163
        %v2165 = vpop.xlane.xlu0 %2164
        %v2166 = vrcp.pop %v2156
        %v2167 = vrcp.pop %v2159
        %v2168 = vrcp.pop %v2162
        %v2169 = vrcp.pop %v2165
        %v2170 = vmul.f32 %v2147, %v2166
        %v2171 = vmul.f32 %v2149, %v2167
        %v2172 = vmul.f32 %v2151, %v2168
        %v2173 = vmul.f32 %v2153, %v2169
        %2178 = vrot.lane.b32.xlu0 %v2170, 24
        %v2179 = vpop.permute.xlu0 %2178
        %2180 = vrot.lane.b32.xlu0 %v2171, 24
        %v2181 = vpop.permute.xlu0 %2180
        %2182 = vrot.lane.b32.xlu0 %v2172, 24
        %v2183 = vpop.permute.xlu0 %2182
        %2184 = vrot.lane.b32.xlu0 %v2173, 24
        %v2185 = vpop.permute.xlu0 %2184
        %vm2190 = vcmask 261312
        %2191 = vst.msk [vmem:[%s326] sm:$0xff] %vm2190, %v2179
        %2192 = vst.msk [vmem:[%s326 + $0x8] sm:$0xff] %vm2190, %v2181
        %2193 = vst.msk [vmem:[%s326 + $0x10] sm:$0xff] %vm2190, %v2183
        %2194 = vst.msk [vmem:[%s326 + $0x18] sm:$0xff] %vm2190, %v2185
        %v2195 = vpack.c.bf16 %v2170, %v2170
        %v2196 = vpack.c.bf16 %v2171, %v2171
        %v2197 = vpack.c.bf16 %v2172, %v2172
        %v2198 = vpack.c.bf16 %v2173, %v2173
        %2199 = vrot.lane.b32.xlu0 %v502, 72
        %v2200 = vpop.permute.xlu0 %2199
        %v2202 = vsel %vm510, %v2195, 0
        %v2205 = vsel %vm757, %v2200, 0
        %2207 = vmatprep.subr.bf16.mxu0 0
        %2208 = vmatpush1.bf16.msra.mxu0 %v2205
        %2209 = vmatprep.subr.bf16.mxu0 0
        %2210 = vmatpush1.bf16.msra.mxu0 0
        %2211 = vmatprep.subr.bf16.mxu0 0
        %2212 = vmatpush1.bf16.msra.mxu0 0
        %2213 = vmatprep.subr.bf16.mxu0 0
        %2214 = vmatpush1.bf16.msra.mxu0 0
        %2215 = vmatprep.subr.bf16.mxu0 0
        %2216 = vmatpush1.bf16.msra.mxu0 0
        %2217 = vmatprep.subr.bf16.mxu0 0
        %2218 = vmatpush1.bf16.msra.mxu0 0
        %2219 = vmatprep.subr.bf16.mxu0 0
        %2220 = vmatpush1.bf16.msra.mxu0 0
        %2221 = vmatprep.subr.bf16.mxu0 0
        %2222 = vmatpush1.bf16.msra.mxu0 0
        %2223 = vmatprep.subr.bf16.mxu0 0
        %2224 = vmatpush1.bf16.msra.mxu0 0
        %2225 = vmatprep.subr.bf16.mxu0 0
        %2226 = vmatpush1.bf16.msra.mxu0 0
        %2227 = vmatprep.subr.bf16.mxu0 0
        %2228 = vmatpush1.bf16.msra.mxu0 0
        %2229 = vmatprep.subr.bf16.mxu0 0
        %2230 = vmatpush1.bf16.msra.mxu0 0
        %2231 = vmatprep.subr.bf16.mxu0 0
        %2232 = vmatpush1.bf16.msra.mxu0 0
        %2233 = vmatprep.subr.bf16.mxu0 0
        %2234 = vmatpush1.bf16.msra.mxu0 0
        %2235 = vmatprep.subr.bf16.mxu0 0
        %2236 = vmatpush1.bf16.msra.mxu0 0
        %2237 = vmatprep.subr.bf16.mxu0 0
        %2238 = vmatpush1.bf16.msra.mxu0 0
        %2239 = vmatprep.mubr.bf16.mxu0 0
        %2240 = vmatmul.mubr.bf16.gmra.mrb[0].mxu0 %v2202
        %v2241 = vpop.f32.mrb[0].mxu0
        %v2242 = vadd.f32 0.0, %v2241
        %v2243 = vpop.f32.mrb[0].mxu0
        %v2244 = vpop.f32.mrb[0].mxu0
        %v2245 = vpop.f32.mrb[0].mxu0
        %2246 = vdwg.mxu0
        %2247 = vrot.lane.b32.xlu0 %v503, 72
        %v2248 = vpop.permute.xlu0 %2247
        %v2250 = vsel %vm510, %v2196, 0
        %v2253 = vsel %vm757, %v2248, 0
        %2255 = vmatprep.subr.bf16.mxu0 0
        %2256 = vmatpush1.bf16.msra.mxu0 %v2253
        %2257 = vmatprep.subr.bf16.mxu0 0
        %2258 = vmatpush1.bf16.msra.mxu0 0
        %2259 = vmatprep.subr.bf16.mxu0 0
        %2260 = vmatpush1.bf16.msra.mxu0 0
        %2261 = vmatprep.subr.bf16.mxu0 0
        %2262 = vmatpush1.bf16.msra.mxu0 0
        %2263 = vmatprep.subr.bf16.mxu0 0
        %2264 = vmatpush1.bf16.msra.mxu0 0
        %2265 = vmatprep.subr.bf16.mxu0 0
        %2266 = vmatpush1.bf16.msra.mxu0 0
        %2267 = vmatprep.subr.bf16.mxu0 0
        %2268 = vmatpush1.bf16.msra.mxu0 0
        %2269 = vmatprep.subr.bf16.mxu0 0
        %2270 = vmatpush1.bf16.msra.mxu0 0
        %2271 = vmatprep.subr.bf16.mxu0 0
        %2272 = vmatpush1.bf16.msra.mxu0 0
        %2273 = vmatprep.subr.bf16.mxu0 0
        %2274 = vmatpush1.bf16.msra.mxu0 0
        %2275 = vmatprep.subr.bf16.mxu0 0
        %2276 = vmatpush1.bf16.msra.mxu0 0
        %2277 = vmatprep.subr.bf16.mxu0 0
        %2278 = vmatpush1.bf16.msra.mxu0 0
        %2279 = vmatprep.subr.bf16.mxu0 0
        %2280 = vmatpush1.bf16.msra.mxu0 0
        %2281 = vmatprep.subr.bf16.mxu0 0
        %2282 = vmatpush1.bf16.msra.mxu0 0
        %2283 = vmatprep.subr.bf16.mxu0 0
        %2284 = vmatpush1.bf16.msra.mxu0 0
        %2285 = vmatprep.subr.bf16.mxu0 0
        %2286 = vmatpush1.bf16.msra.mxu0 0
        %2287 = vmatprep.mubr.bf16.mxu0 0
        %2288 = vmatmul.mubr.bf16.gmra.mrb[0].mxu0 %v2250
        %v2289 = vpop.f32.mrb[0].mxu0
        %v2290 = vadd.f32 0.0, %v2289
        %v2291 = vpop.f32.mrb[0].mxu0
        %v2292 = vpop.f32.mrb[0].mxu0
        %v2293 = vpop.f32.mrb[0].mxu0
        %2294 = vdwg.mxu0
        %2295 = vrot.lane.b32.xlu0 %v504, 72
        %v2296 = vpop.permute.xlu0 %2295
        %v2298 = vsel %vm510, %v2197, 0
        %v2301 = vsel %vm757, %v2296, 0
        %2303 = vmatprep.subr.bf16.mxu0 0
        %2304 = vmatpush1.bf16.msra.mxu0 %v2301
        %2305 = vmatprep.subr.bf16.mxu0 0
        %2306 = vmatpush1.bf16.msra.mxu0 0
        %2307 = vmatprep.subr.bf16.mxu0 0
        %2308 = vmatpush1.bf16.msra.mxu0 0
        %2309 = vmatprep.subr.bf16.mxu0 0
        %2310 = vmatpush1.bf16.msra.mxu0 0
        %2311 = vmatprep.subr.bf16.mxu0 0
        %2312 = vmatpush1.bf16.msra.mxu0 0
        %2313 = vmatprep.subr.bf16.mxu0 0
        %2314 = vmatpush1.bf16.msra.mxu0 0
        %2315 = vmatprep.subr.bf16.mxu0 0
        %2316 = vmatpush1.bf16.msra.mxu0 0
        %2317 = vmatprep.subr.bf16.mxu0 0
        %2318 = vmatpush1.bf16.msra.mxu0 0
        %2319 = vmatprep.subr.bf16.mxu0 0
        %2320 = vmatpush1.bf16.msra.mxu0 0
        %2321 = vmatprep.subr.bf16.mxu0 0
        %2322 = vmatpush1.bf16.msra.mxu0 0
        %2323 = vmatprep.subr.bf16.mxu0 0
        %2324 = vmatpush1.bf16.msra.mxu0 0
        %2325 = vmatprep.subr.bf16.mxu0 0
        %2326 = vmatpush1.bf16.msra.mxu0 0
        %2327 = vmatprep.subr.bf16.mxu0 0
        %2328 = vmatpush1.bf16.msra.mxu0 0
        %2329 = vmatprep.subr.bf16.mxu0 0
        %2330 = vmatpush1.bf16.msra.mxu0 0
        %2331 = vmatprep.subr.bf16.mxu0 0
        %2332 = vmatpush1.bf16.msra.mxu0 0
        %2333 = vmatprep.subr.bf16.mxu0 0
        %2334 = vmatpush1.bf16.msra.mxu0 0
        %2335 = vmatprep.mubr.bf16.mxu0 0
        %2336 = vmatmul.mubr.bf16.gmra.mrb[0].mxu0 %v2298
        %v2337 = vpop.f32.mrb[0].mxu0
        %v2338 = vadd.f32 0.0, %v2337
        %v2339 = vpop.f32.mrb[0].mxu0
        %v2340 = vpop.f32.mrb[0].mxu0
        %v2341 = vpop.f32.mrb[0].mxu0
        %2342 = vdwg.mxu0
        %2343 = vrot.lane.b32.xlu0 %v505, 72
        %v2344 = vpop.permute.xlu0 %2343
        %v2346 = vsel %vm510, %v2198, 0
        %v2349 = vsel %vm757, %v2344, 0
        %2351 = vmatprep.subr.bf16.mxu0 0
        %2352 = vmatpush1.bf16.msra.mxu0 %v2349
        %2353 = vmatprep.subr.bf16.mxu0 0
        %2354 = vmatpush1.bf16.msra.mxu0 0
        %2355 = vmatprep.subr.bf16.mxu0 0
        %2356 = vmatpush1.bf16.msra.mxu0 0
        %2357 = vmatprep.subr.bf16.mxu0 0
        %2358 = vmatpush1.bf16.msra.mxu0 0
        %2359 = vmatprep.subr.bf16.mxu0 0
        %2360 = vmatpush1.bf16.msra.mxu0 0
        %2361 = vmatprep.subr.bf16.mxu0 0
        %2362 = vmatpush1.bf16.msra.mxu0 0
        %2363 = vmatprep.subr.bf16.mxu0 0
        %2364 = vmatpush1.bf16.msra.mxu0 0
        %2365 = vmatprep.subr.bf16.mxu0 0
        %2366 = vmatpush1.bf16.msra.mxu0 0
        %2367 = vmatprep.subr.bf16.mxu0 0
        %2368 = vmatpush1.bf16.msra.mxu0 0
        %2369 = vmatprep.subr.bf16.mxu0 0
        %2370 = vmatpush1.bf16.msra.mxu0 0
        %2371 = vmatprep.subr.bf16.mxu0 0
        %2372 = vmatpush1.bf16.msra.mxu0 0
        %2373 = vmatprep.subr.bf16.mxu0 0
        %2374 = vmatpush1.bf16.msra.mxu0 0
        %2375 = vmatprep.subr.bf16.mxu0 0
        %2376 = vmatpush1.bf16.msra.mxu0 0
        %2377 = vmatprep.subr.bf16.mxu0 0
        %2378 = vmatpush1.bf16.msra.mxu0 0
        %2379 = vmatprep.subr.bf16.mxu0 0
        %2380 = vmatpush1.bf16.msra.mxu0 0
        %2381 = vmatprep.subr.bf16.mxu0 0
        %2382 = vmatpush1.bf16.msra.mxu0 0
        %2383 = vmatprep.mubr.bf16.mxu0 0
        %2384 = vmatmul.mubr.bf16.gmra.mrb[0].mxu0 %v2346
        %v2385 = vpop.f32.mrb[0].mxu0
        %v2386 = vadd.f32 0.0, %v2385
        %v2387 = vpop.f32.mrb[0].mxu0
        %v2388 = vpop.f32.mrb[0].mxu0
        %v2389 = vpop.f32.mrb[0].mxu0
        %2390 = vdwg.mxu0
        %2395 = vrot.lane.b32.xlu0 %v2242, 24
        %v2396 = vpop.permute.xlu0 %2395
        %2397 = vrot.lane.b32.xlu0 %v2290, 24
        %v2398 = vpop.permute.xlu0 %2397
        %2399 = vrot.lane.b32.xlu0 %v2338, 24
        %v2400 = vpop.permute.xlu0 %2399
        %2401 = vrot.lane.b32.xlu0 %v2386, 24
        %v2402 = vpop.permute.xlu0 %2401
        %2407 = vst.msk [vmem:[#allocation2] sm:$0xff] %vm2190, %v2396
        %2408 = vst.msk [vmem:[#allocation2 + $0x8] sm:$0xff] %vm2190, %v2398
        %2409 = vst.msk [vmem:[#allocation2 + $0x10] sm:$0xff] %vm2190, %v2400
        %2410 = vst.msk [vmem:[#allocation2 + $0x18] sm:$0xff] %vm2190, %v2402
        %v2411 = vld [vmem:[#allocation2] sm:$0xff]
        %v2412 = vld [vmem:[#allocation2 + $0x8] sm:$0xff]
        %v2413 = vld [vmem:[#allocation2 + $0x10] sm:$0xff]
        %v2414 = vld [vmem:[#allocation2 + $0x18] sm:$0xff]
        %v2415 = vpack.c.bf16 %v2412, %v2411
        %v2416 = vpack.c.bf16 %v2414, %v2413
        %v2417 = vld [vmem:[%s5] sm:$0xf]
        %v2418 = vld [vmem:[%s5 + $0x4] sm:$0xf]
        %v2419 = vld [vmem:[%s5 + $0x8] sm:$0xf]
        %v2420 = vld [vmem:[%s5 + $0xc] sm:$0xf]
        %v2421 = vld [vmem:[%s6] sm:$0x1]
        %v2423 = vlaneseq
        %v2424 = vshrl.u32 %v2423, 7
        %v2425 = vsub.s32 0, %v2424
        %v2426 = vrot.slane %v2421, %v2425
        %v2432 = vunpack.c.l.b16 %v2417
        %v2433 = vunpack.c.l.b16 %v2418
        %v2434 = vunpack.c.l.b16 %v2419
        %v2435 = vunpack.c.l.b16 %v2420
        %v2436 = vpack.c.b16 %v2433, %v2432
        %v2437 = vpack.c.b16 %v2435, %v2434
        %v2441 = vsel %vm375, %v2415, 0
        %v2444 = vsel %vm375, %v2416, 0
        %2446 = vmatprep.subr.bf16.mxu0 0
        %2447 = vmatpush1.bf16.msra.mxu0 %v2436
        %2448 = vmatprep.subr.bf16.mxu0 0
        %2449 = vmatpush1.bf16.msra.mxu0 %v2437
        %2450 = vmatprep.subr.bf16.mxu0 0
        %2451 = vmatpush1.bf16.msra.mxu0 0
        %2452 = vmatprep.subr.bf16.mxu0 0
        %2453 = vmatpush1.bf16.msra.mxu0 0
        %2454 = vmatprep.subr.bf16.mxu0 0
        %2455 = vmatpush1.bf16.msra.mxu0 0
        %2456 = vmatprep.subr.bf16.mxu0 0
        %2457 = vmatpush1.bf16.msra.mxu0 0
        %2458 = vmatprep.subr.bf16.mxu0 0
        %2459 = vmatpush1.bf16.msra.mxu0 0
        %2460 = vmatprep.subr.bf16.mxu0 0
        %2461 = vmatpush1.bf16.msra.mxu0 0
        %2462 = vmatprep.subr.bf16.mxu0 0
        %2463 = vmatpush1.bf16.msra.mxu0 0
        %2464 = vmatprep.subr.bf16.mxu0 0
        %2465 = vmatpush1.bf16.msra.mxu0 0
        %2466 = vmatprep.subr.bf16.mxu0 0
        %2467 = vmatpush1.bf16.msra.mxu0 0
        %2468 = vmatprep.subr.bf16.mxu0 0
        %2469 = vmatpush1.bf16.msra.mxu0 0
        %2470 = vmatprep.subr.bf16.mxu0 0
        %2471 = vmatpush1.bf16.msra.mxu0 0
        %2472 = vmatprep.subr.bf16.mxu0 0
        %2473 = vmatpush1.bf16.msra.mxu0 0
        %2474 = vmatprep.subr.bf16.mxu0 0
        %2475 = vmatpush1.bf16.msra.mxu0 0
        %2476 = vmatprep.subr.bf16.mxu0 0
        %2477 = vmatpush1.bf16.msra.mxu0 0
        %2478 = vmatprep.mubr.bf16.mxu0 0
        %2479 = vmatmul.mubr.bf16.gmra.mrb[0].mxu0 %v2441
        %v2480 = vpop.f32.mrb[0].mxu0
        %v2481 = vadd.f32 %v2426, %v2480
        %v2482 = vpop.f32.mrb[0].mxu0
        %v2483 = vpop.f32.mrb[0].mxu0
        %v2484 = vadd.f32 %v2426, %v2483
        %v2485 = vpop.f32.mrb[0].mxu0
        %2486 = vmatprep.mubr.bf16.mxu0 0
        %2487 = vmatmul.mubr.bf16.gmra.mrb[0].mxu0 %v2444
        %v2488 = vpop.f32.mrb[0].mxu0
        %v2489 = vadd.f32 %v2426, %v2488
        %v2490 = vpop.f32.mrb[0].mxu0
        %v2491 = vpop.f32.mrb[0].mxu0
        %v2492 = vadd.f32 %v2426, %v2491
        %v2493 = vpop.f32.mrb[0].mxu0
        %2494 = vdwg.mxu0
        %v2495 = vmax.f32 %v2481, 0.0
        %v2496 = vmax.f32 %v2484, 0.0
        %v2497 = vmax.f32 %v2489, 0.0
        %v2498 = vmax.f32 %v2492, 0.0
        %v2499 = vadd.f32 %v2495, %v2411
        %v2500 = vadd.f32 %v2496, %v2412
        %v2501 = vadd.f32 %v2497, %v2413
        %v2502 = vadd.f32 %v2498, %v2414
        %v2503 = vadd.f32 %v2499, %v347
        %v2504 = vadd.f32 %v2500, %v348
        %v2505 = vadd.f32 %v2501, %v349
        %v2506 = vadd.f32 %v2502, %v350
        %v2507 = vsel %vm375, %v2503, 0.0
        %v2508 = vrot.slane %v2507, 4
        %v2509 = vadd.f32 %v2507, %v2508
        %v2510 = vrot.slane %v2509, 2
        %v2511 = vadd.f32 %v2509, %v2510
        %v2512 = vrot.slane %v2511, 1
        %v2513 = vadd.f32 %v2511, %v2512
        %v2514 = vsel %vm375, %v2504, 0.0
        %v2515 = vrot.slane %v2514, 4
        %v2516 = vadd.f32 %v2514, %v2515
        %v2517 = vrot.slane %v2516, 2
        %v2518 = vadd.f32 %v2516, %v2517
        %v2519 = vrot.slane %v2518, 1
        %v2520 = vadd.f32 %v2518, %v2519
        %v2521 = vsel %vm375, %v2505, 0.0
        %v2522 = vrot.slane %v2521, 4
        %v2523 = vadd.f32 %v2521, %v2522
        %v2524 = vrot.slane %v2523, 2
        %v2525 = vadd.f32 %v2523, %v2524
        %v2526 = vrot.slane %v2525, 1
        %v2527 = vadd.f32 %v2525, %v2526
        %v2528 = vsel %vm375, %v2506, 0.0
        %v2529 = vrot.slane %v2528, 4
        %v2530 = vadd.f32 %v2528, %v2529
        %v2531 = vrot.slane %v2530, 2
        %v2532 = vadd.f32 %v2530, %v2531
        %v2533 = vrot.slane %v2532, 1
        %v2534 = vadd.f32 %v2532, %v2533
        %v2535 = vrcp.pop 8.0
        %v2536 = vmul.f32 %v2513, %v2535
        %v2537 = vmul.f32 %v2520, %v2535
        %v2538 = vmul.f32 %v2527, %v2535
        %v2539 = vmul.f32 %v2534, %v2535
        %vm2540 = vcmask 253952
        %2541 = vst.msk [vmem:[%s319] sm:$0x1] %vm2540, %v2536
        %2542 = vst.msk [vmem:[%s319 + $0x1] sm:$0x1] %vm2540, %v2537
        %2543 = vst.msk [vmem:[%s319 + $0x2] sm:$0x1] %vm2540, %v2538
        %2544 = vst.msk [vmem:[%s319 + $0x3] sm:$0x1] %vm2540, %v2539
        %s2545 = sand.u32 %s191, 1
        %s2546 = scalar_lea.sflag [#allocation4], %s2545
        %s2547 = sand.u32 %s191, 1
        %s2548 = smul.addr %s2547, 4
        %s2549 = scalar_lea.vmem [#allocation3], %s2548
        %s2550 = sand.u32 %s217, 1
        %s2551 = scalar_lea.sflag [#allocation6], %s2550
        %s2552 = sand.u32 %s217, 1
        %s2553 = smul.addr %s2552, 32
        %s2554 = scalar_lea.vmem [#allocation5], %s2553
        // Predicated region
        $region49: #{temporal_attention_forward.1} parent=47 // pred_check
          %p2555 = pneg %p201
        $region50: #{temporal_attention_forward.1} parent=47 // pred_check_branch
          %2557 = sbr.rel (%p2555) target = $region52
        $region51: #{temporal_attention_forward.1} parent=47 // pred_region
          %s2558 = smul.u32 4, %s26
          %s2560 = ssub.s32 64, 64
          %2561 = vsyncadd %s2546, %s2560
          %s2562 = smul.addr %s2558, 16
          %s2563 = scalar_lea.hbm %s7, %s2562
          %s2564 = sshll.u32 %s2549, 4
          %s2565 = int_to_ptr.vmem [resolvable:$true] %s2564
          %2570 = dma.vmem_to_hbm [thread:$0]  %s2565, 64, %s2563, %s2546, 16, 16, 1
        $region52: #{temporal_attention_forward.1} parent=47 // pred_fallthru
          _
        // Predicated region
        $region53: #{temporal_attention_forward.1} parent=47 // pred_check
          %p2571 = pneg %p227
        $region54: #{temporal_attention_forward.1} parent=47 // pred_check_branch
          %2573 = sbr.rel (%p2571) target = $region56
        $region55: #{temporal_attention_forward.1} parent=47 // pred_region
          %s2574 = smul.u32 4, %s26
          %s2576 = ssub.s32 512, 512
          %2577 = vsyncadd %s2551, %s2576
          %s2578 = smul.addr %s2574, 128
          %s2579 = scalar_lea.hbm %s8, %s2578
          %s2580 = sshll.u32 %s2554, 4
          %s2581 = int_to_ptr.vmem [resolvable:$true] %s2580
          %2586 = dma.vmem_to_hbm [thread:$0]  %s2581, 512, %s2579, %s2551, 128, 128, 8
        $region56: #{temporal_attention_forward.1} parent=47 // pred_fallthru
          _
      $region48: #{temporal_attention_forward.1} parent=5 // pred_fallthru
        _
      %p2587 = scmp.le.s32.totalorder 2, %s21
      // Predicated region
      $region57: #{temporal_attention_forward.1} parent=5 // pred_check
        %p2588 = pneg %p2587
      $region58: #{temporal_attention_forward.1} parent=5 // pred_check_branch
        %2590 = sbr.rel (%p2588) target = $region60
      $region59: #{temporal_attention_forward.1} parent=5 // pred_region
        %s2591 = ssub.s32 %s21, 2
        // Predicated region
        $region61: #{temporal_attention_forward.1} parent=59 // pred_check
          %p2592 = pneg %p207
        $region62: #{temporal_attention_forward.1} parent=59 // pred_check_branch
          %2594 = sbr.rel (%p2592) target = $region64
        $region63: #{temporal_attention_forward.1} parent=59 // pred_region
          %s2595 = sand.u32 %s192, 1
          %s2596 = scalar_lea.sflag [#allocation4], %s2595
          %s2597 = sand.u32 %s192, 1
          %s2598 = smul.addr %s2597, 4
          %s2599 = scalar_lea.vmem [#allocation3], %s2598
          %2600 = dma.done %s2596, 64
        $region64: #{temporal_attention_forward.1} parent=59 // pred_fallthru
          _
        // Predicated region
        $region65: #{temporal_attention_forward.1} parent=59 // pred_check
          %p2601 = pneg %p233
        $region66: #{temporal_attention_forward.1} parent=59 // pred_check_branch
          %2603 = sbr.rel (%p2601) target = $region68
        $region67: #{temporal_attention_forward.1} parent=59 // pred_region
          %s2604 = sand.u32 %s218, 1
          %s2605 = scalar_lea.sflag [#allocation6], %s2604
          %s2606 = sand.u32 %s218, 1
          %s2607 = smul.addr %s2606, 32
          %s2608 = scalar_lea.vmem [#allocation5], %s2607
          %2609 = dma.done %s2605, 512
        $region68: #{temporal_attention_forward.1} parent=59 // pred_fallthru
          _
      $region60: #{temporal_attention_forward.1} parent=5 // pred_fallthru
        _
    $region6: #{temporal_attention_forward.1} parent=1 // loop_footer
      %s25 = sadd.s32 1, %s21
    $region7: #{temporal_attention_forward.1} parent=1 // loop_footer_branch
      %20 = sbr.rel target = $region3
    $region8: #{temporal_attention_forward.1} parent=1 // loop_exit
      _
    %2610 = vsyncpa [#allocation4], 1
    %s2611 = scalar_lea.sflag [#allocation4], 1
    %2612 = vsyncpa %s2611, 1
    %2613 = vsyncpa [#allocation6], 1
    %s2614 = scalar_lea.sflag [#allocation6], 1
    %2615 = vsyncpa %s2614, 1

</llo_original>
